<compile_context>
chip_gen: v7x
topology: tpu7x:2x2x1
jax: 0.10.0
libtpu: 0.0.40
codegen_flags: <defaults>
</compile_context>

<pallas_src>
import functools

import jax
import jax.numpy as jnp
from jax.experimental import pallas as pl
from jax.experimental.pallas import tpu as pltpu


# Logical (PyTorch-like) dimensions of the synthetic encoder.
IN_CH, HIDDEN, NUM_CLASS, FEAT_DIM = 4, 32, 10, 16
K_CONV = 9 * IN_CH          # im2col contraction (kh, kw, c) = 36; unpadded in HBM

# Lane-padded widths for HBM-visible outputs / VMEM-resident weights.
LANE = 128
HP = LANE                    # hidden width  32 -> 128
OP = LANE                    # class logits  10 -> 128
FP = LANE                    # feature dim   16 -> 128
PACKED = 2 * LANE            # [fc | head_l1] packed along N -> one 256-wide GEMM


# ----------------------------------------------------------------------------
# Pallas kernel: fully fused encoder
# ----------------------------------------------------------------------------
def _encoder_kernel(*refs, hw, imgs_per_blk, inv_hw, with_feat):
    """conv(+ReLU) -> global-average-pool -> fc / mlp-head(+L2 norm), fused.

    Each grid step owns `imgs_per_blk` whole images (imgs_per_blk * hw im2col
    rows) and writes that block of logits / features directly: no cross-step
    accumulator, every step independent.
    """
    if with_feat:
        (x_ref, cw_ref, cb_ref, pw_ref, pb_ref, w2_ref, b2_ref,
         logits_ref, feat_ref) = refs
    else:
        (x_ref, cw_ref, cb_ref, pw_ref, pb_ref, logits_ref) = refs

    # Conv as matmul: (imgs*hw, 36) bf16 @ (36, HP) bf16 -> f32 on the MXU.
    y = jnp.dot(x_ref[...], cw_ref[...], preferred_element_type=jnp.float32)
    y = jnp.maximum(y + cb_ref[...], 0.0)

    # Global average pool per image: one reduce over the hw axis.
    pooled = jnp.sum(y.reshape(imgs_per_blk, hw, HP), axis=1) * inv_hw
    pooled = pooled.astype(jnp.bfloat16)

    # Packed tail matmul: [class logits | head hidden] in a single N=256 GEMM
    # (N=128 fc-only in eval mode).
    lz = jnp.dot(pooled, pw_ref[...], preferred_element_type=jnp.float32)
    lz = lz + pb_ref[...]

    if not with_feat:
        logits_ref[...] = lz
        return

    logits_ref[...] = lz[:, :OP]
    z = jnp.maximum(lz[:, OP:], 0.0).astype(jnp.bfloat16)
    z2 = jnp.dot(z, w2_ref[...], preferred_element_type=jnp.float32) + b2_ref[...]
    # Padded feature lanes are exactly zero (zero weight cols / bias lanes), so
    # the L2 norm over 128 lanes equals the norm over the FEAT_DIM lanes.
    inv = jax.lax.rsqrt(jnp.sum(z2 * z2, axis=-1, keepdims=True) + 1e-12)
    feat_ref[...] = z2 * inv


# ----------------------------------------------------------------------------
# Pallas wrapper
# ----------------------------------------------------------------------------
def _pick_imgs_per_block(total_imgs, hw):
    # Target ~2048 im2col rows per grid step (amortizes the ~0.35us/step
    # pipeline overhead).  A (2048, 36) bf16 block is ~144 KiB per buffer, far
    # below the 32 MiB default scoped VMEM on every generation (incl. v7x).
    target = max(1, 2048 // hw)
    if total_imgs <= max(target, 8):
        return total_imgs            # single/few steps: full-dim block is legal
    best = None
    for cand in range(8, target + 1, 8):        # multiple-of-8 image groups so
        if total_imgs % cand == 0 and (cand * hw) % 8 == 0:   # blocks stay (8,128) legal
            best = cand
    return best if best is not None else total_imgs


def _encode(cols, cw, cb, pw, pb, w2, b2, total_imgs, hw, with_feat):
    """cols: (total_imgs*hw, K_CONV) bf16 -> logits (and features) per image."""
    ipb = _pick_imgs_per_block(total_imgs, hw)
    tm = ipb * hw
    grid = (total_imgs // ipb,)

    kernel = functools.partial(_encoder_kernel, hw=hw, imgs_per_blk=ipb,
                               inv_hw=1.0 / hw, with_feat=with_feat)

    in_specs = [
        pl.BlockSpec((tm, K_CONV), lambda i: (i, 0)),   # im2col rows (K=36, no HBM pad)
        pl.BlockSpec((K_CONV, HP), lambda i: (0, 0)),   # conv weight (VMEM resident)
        pl.BlockSpec((1, HP), lambda i: (0, 0)),        # conv bias
        pl.BlockSpec(pw.shape, lambda i: (0, 0)),       # packed [fc | head_l1] weight
        pl.BlockSpec(pb.shape, lambda i: (0, 0)),       # packed bias
    ]
    operands = [cols, cw, cb, pw, pb]
    out_shape = [jax.ShapeDtypeStruct((total_imgs, OP), jnp.float32)]
    out_specs = [pl.BlockSpec((ipb, OP), lambda i: (i, 0))]
    if with_feat:
        in_specs += [pl.BlockSpec(w2.shape, lambda i: (0, 0)),
                     pl.BlockSpec(b2.shape, lambda i: (0, 0))]
        operands += [w2, b2]
        out_shape.append(jax.ShapeDtypeStruct((total_imgs, FP), jnp.float32))
        out_specs.append(pl.BlockSpec((ipb, FP), lambda i: (i, 0)))

    outs = pl.pallas_call(
        kernel,
        out_shape=tuple(out_shape),
        grid=grid,
        in_specs=in_specs,
        out_specs=tuple(out_specs),
        compiler_params=pltpu.CompilerParams(
            dimension_semantics=("parallel",)),
    )(*operands)
    if with_feat:
        logits, feat = outs
        return logits, feat
    return outs[0]


# ----------------------------------------------------------------------------
# Glue: im2col for a 3x3 / pad=1 / stride=1 conv (patch axis minor, no pad).
# ----------------------------------------------------------------------------
def im2col_3x3(x):
    """NCHW (B,C,H,W) -> ((B*H*W, 9*C) bf16, H*W).

    Built from NHWC shifted views concatenated along the last axis: the
    9x-expanded intermediate is never transposed and never lane-padded in HBM.
    Patch order is (kh, kw, c); the conv weight uses the matching
    HWIO-flattened layout (torch equivalent: weight.permute(2, 3, 1, 0)).
    """
    b, c, h, w = x.shape
    xh = jnp.transpose(x, (0, 2, 3, 1)).astype(jnp.bfloat16)   # small raw-input copy
    xp = jnp.pad(xh, ((0, 0), (1, 1), (1, 1), (0, 0)))
    views = [xp[:, dh:dh + h, dw:dw + w, :] for dh in range(3) for dw in range(3)]
    cols = jnp.concatenate(views, axis=-1)                      # (B, H, W, 9*C)
    return cols.reshape(b * h * w, 9 * c), h * w


def _pad2(x, rows, cols):
    r, c = x.shape
    return jnp.pad(x, ((0, rows - r), (0, cols - c)))


# ----------------------------------------------------------------------------
# Synthetic base_encoder parameters and conStu forward
# ----------------------------------------------------------------------------
def init_params(key):
    ks = jax.random.split(key, 4)
    scale = 0.1
    return {
        # conv_w is HWIO-flattened: rows ordered (kh, kw, c), matching im2col.
        "conv_w": scale * jax.random.normal(ks[0], (K_CONV, HIDDEN), jnp.float32),
        "conv_b": jnp.zeros((1, HIDDEN), jnp.float32),
        "fc_w":   scale * jax.random.normal(ks[1], (HIDDEN, NUM_CLASS), jnp.float32),
        "fc_b":   jnp.zeros((1, NUM_CLASS), jnp.float32),
        "head_w1": scale * jax.random.normal(ks[2], (HIDDEN, HIDDEN), jnp.float32),
        "head_b1": jnp.zeros((1, HIDDEN), jnp.float32),
        "head_w2": scale * jax.random.normal(ks[3], (HIDDEN, FEAT_DIM), jnp.float32),
        "head_b2": jnp.zeros((1, FEAT_DIM), jnp.float32),
    }


def constu_forward(params, img_s, img_distill, eval_only=False):
    # Lane-pad weights once (zero rows/cols/bias lanes: exact numerical no-op).
    cw = _pad2(params["conv_w"], K_CONV, HP).astype(jnp.bfloat16)   # K stays 36
    cb = _pad2(params["conv_b"], 1, HP)
    fc_w = _pad2(params["fc_w"], HP, OP)
    fc_b = _pad2(params["fc_b"], 1, OP)

    if eval_only:
        # Only encoder(img_distill) logits are needed: skip the student conv
        # pass and the whole mlp head.
        total = img_distill.shape[0]
        cols, hw = im2col_3x3(img_distill)
        logits = _encode(cols, cw, cb, fc_w.astype(jnp.bfloat16), fc_b,
                         None, None, total, hw, with_feat=False)
        return logits[:, :NUM_CLASS]

    n = img_s.shape[0]
    # Batch both encoder passes: rows [0, n) = student, [n, 2n) = distill.
    imgs = jnp.concatenate([img_s, img_distill], axis=0)
    cols, hw = im2col_3x3(imgs)

    # Pack fc and head-linear1 along N -> one 256-wide tail matmul.
    pw = jnp.concatenate([fc_w, _pad2(params["head_w1"], HP, HP)],
                         axis=1).astype(jnp.bfloat16)
    pb = jnp.concatenate([fc_b, _pad2(params["head_b1"], 1, HP)], axis=1)
    w2 = _pad2(params["head_w2"], HP, FP).astype(jnp.bfloat16)
    b2 = _pad2(params["head_b2"], 1, FP)

    logits, feat = _encode(cols, cw, cb, pw, pb, w2, b2, 2 * n, hw,
                           with_feat=True)
    output_s = logits[n:, :NUM_CLASS]    # encoder(img_distill) -> class logits
    feat_s = feat[:n, :FEAT_DIM]         # encoder(img_s)       -> L2-norm feat
    return output_s, feat_s


# ----------------------------------------------------------------------------
if __name__ == "__main__":
    key = jax.random.PRNGKey(0)
    k_param, k_s, k_d = jax.random.split(key, 3)

    params = init_params(k_param)
    img_s = jax.random.normal(k_s, (2, IN_CH, 16, 16), jnp.float32)
    img_distill = jax.random.normal(k_d, (2, IN_CH, 16, 16), jnp.float32)

    output_s, feat_s = jax.jit(constu_forward)(params, img_s, img_distill)
    jax.block_until_ready((output_s, feat_s))
    assert output_s.shape == (2, NUM_CLASS)
    assert feat_s.shape == (2, FEAT_DIM)

    # eval_only path: distill images only, logits only.
    eval_fn = jax.jit(functools.partial(constu_forward, eval_only=True))
    output_eval = eval_fn(params, img_s, img_distill)
    jax.block_until_ready(output_eval)
    assert output_eval.shape == (2, NUM_CLASS)
    assert jnp.allclose(output_eval, output_s, atol=1e-2, rtol=1e-2)

    print("KERNEL_OK")
</pallas_src>

<mosaic_0001>
module attributes {stable_mosaic.version = 11 : i64} {
  func.func @_encoder_kernel(%arg0: i32, %arg1: memref<1024x36xbf16, #tpu.memory_space<vmem>>, %arg2: memref<36x128xbf16, #tpu.memory_space<vmem>>, %arg3: memref<1x128xf32, #tpu.memory_space<vmem>>, %arg4: memref<128x256xbf16, #tpu.memory_space<vmem>>, %arg5: memref<1x256xf32, #tpu.memory_space<vmem>>, %arg6: memref<128x128xbf16, #tpu.memory_space<vmem>>, %arg7: memref<1x128xf32, #tpu.memory_space<vmem>>, %arg8: memref<4x128xf32, #tpu.memory_space<vmem>>, %arg9: memref<4x128xf32, #tpu.memory_space<vmem>>) attributes {dimension_semantics = [#tpu.dimension_semantics<parallel>], iteration_bounds = array<i64: 1>, scalar_prefetch = 0 : i64, scratch_operands = 0 : i64, tpu.core_type = #tpu.core_type<tc>, window_params = [{transform_indices = @transform_0, window_bounds = array<i64: 1024, 36>}, {pipeline_mode = #tpu.pipeline_mode<synchronous>, transform_indices = @transform_1, window_bounds = array<i64: 36, 128>}, {pipeline_mode = #tpu.pipeline_mode<synchronous>, transform_indices = @transform_2, window_bounds = array<i64: 1, 128>}, {pipeline_mode = #tpu.pipeline_mode<synchronous>, transform_indices = @transform_3, window_bounds = array<i64: 128, 256>}, {pipeline_mode = #tpu.pipeline_mode<synchronous>, transform_indices = @transform_4, window_bounds = array<i64: 1, 256>}, {pipeline_mode = #tpu.pipeline_mode<synchronous>, transform_indices = @transform_5, window_bounds = array<i64: 128, 128>}, {pipeline_mode = #tpu.pipeline_mode<synchronous>, transform_indices = @transform_6, window_bounds = array<i64: 1, 128>}, {transform_indices = @transform_7, window_bounds = array<i64: 4, 128>}, {transform_indices = @transform_8, window_bounds = array<i64: 4, 128>}]} {
    %c0 = arith.constant 0 : index
    %c0_0 = arith.constant 0 : index
    %0 = vector.load %arg1[%c0, %c0_0] : memref<1024x36xbf16, #tpu.memory_space<vmem>>, vector<1024x36xbf16>
    %c0_1 = arith.constant 0 : index
    %c0_2 = arith.constant 0 : index
    %1 = vector.load %arg2[%c0_1, %c0_2] : memref<36x128xbf16, #tpu.memory_space<vmem>>, vector<36x128xbf16>
    %cst = arith.constant dense<0.000000e+00> : vector<1024x128xf32>
    %2 = tpu.matmul %0, %1, %cst {dimension_numbers = #tpu.dot_dimension_numbers<[1], [0], [0], [1], [0, 0, 1, 1], [], []>} : vector<1024x36xbf16>, vector<36x128xbf16>, vector<1024x128xf32> -> vector<1024x128xf32>
    %c0_3 = arith.constant 0 : index
    %c0_4 = arith.constant 0 : index
    %3 = vector.load %arg3[%c0_3, %c0_4] : memref<1x128xf32, #tpu.memory_space<vmem>>, vector<1x128xf32>
    %4 = vector.broadcast %3 : vector<1x128xf32> to vector<1024x128xf32>
    %5 = arith.addf %2, %4 : vector<1024x128xf32>
    %cst_5 = arith.constant 0.000000e+00 : f32
    %6 = vector.broadcast %cst_5 : f32 to vector<1024x128xf32>
    %7 = arith.maximumf %5, %6 : vector<1024x128xf32>
    %8 = vector.shape_cast %7 : vector<1024x128xf32> to vector<4x256x128xf32>
    %cst_6 = arith.constant dense<0.000000e+00> : vector<4x128xf32>
    %9 = vector.multi_reduction <add>, %8, %cst_6 [1] : vector<4x256x128xf32> to vector<4x128xf32>
    %cst_7 = arith.constant 3.906250e-03 : f32
    %10 = vector.broadcast %cst_7 : f32 to vector<4x128xf32>
    %11 = arith.mulf %9, %10 : vector<4x128xf32>
    %12 = arith.truncf %11 : vector<4x128xf32> to vector<4x128xbf16>
    %c0_8 = arith.constant 0 : index
    %c0_9 = arith.constant 0 : index
    %13 = vector.load %arg4[%c0_8, %c0_9] : memref<128x256xbf16, #tpu.memory_space<vmem>>, vector<128x256xbf16>
    %cst_10 = arith.constant dense<0.000000e+00> : vector<4x256xf32>
    %14 = tpu.matmul %12, %13, %cst_10 {dimension_numbers = #tpu.dot_dimension_numbers<[1], [0], [0], [1], [0, 0, 1, 1], [], []>} : vector<4x128xbf16>, vector<128x256xbf16>, vector<4x256xf32> -> vector<4x256xf32>
    %c0_11 = arith.constant 0 : index
    %c0_12 = arith.constant 0 : index
    %15 = vector.load %arg5[%c0_11, %c0_12] : memref<1x256xf32, #tpu.memory_space<vmem>>, vector<1x256xf32>
    %16 = vector.broadcast %15 : vector<1x256xf32> to vector<4x256xf32>
    %17 = arith.addf %14, %16 : vector<4x256xf32>
    %18 = vector.extract_strided_slice %17 {offsets = [0, 0], sizes = [4, 128], strides = [1, 1]} : vector<4x256xf32> to vector<4x128xf32>
    %c0_13 = arith.constant 0 : index
    %c0_14 = arith.constant 0 : index
    %19 = vector.load %arg8[%c0_13, %c0_14] : memref<4x128xf32, #tpu.memory_space<vmem>>, vector<4x128xf32>
    tpu.vector_store %arg8[%c0_13, %c0_14], %18 {strides = array<i32>} : memref<4x128xf32, #tpu.memory_space<vmem>>, vector<4x128xf32>,
    %20 = vector.extract_strided_slice %17 {offsets = [0, 128], sizes = [4, 128], strides = [1, 1]} : vector<4x256xf32> to vector<4x128xf32>
    %cst_15 = arith.constant 0.000000e+00 : f32
    %21 = vector.broadcast %cst_15 : f32 to vector<4x128xf32>
    %22 = arith.maximumf %20, %21 : vector<4x128xf32>
    %23 = arith.truncf %22 : vector<4x128xf32> to vector<4x128xbf16>
    %c0_16 = arith.constant 0 : index
    %c0_17 = arith.constant 0 : index
    %24 = vector.load %arg6[%c0_16, %c0_17] : memref<128x128xbf16, #tpu.memory_space<vmem>>, vector<128x128xbf16>
    %cst_18 = arith.constant dense<0.000000e+00> : vector<4x128xf32>
    %25 = tpu.matmul %23, %24, %cst_18 {dimension_numbers = #tpu.dot_dimension_numbers<[1], [0], [0], [1], [0, 0, 1, 1], [], []>} : vector<4x128xbf16>, vector<128x128xbf16>, vector<4x128xf32> -> vector<4x128xf32>
    %c0_19 = arith.constant 0 : index
    %c0_20 = arith.constant 0 : index
    %26 = vector.load %arg7[%c0_19, %c0_20] : memref<1x128xf32, #tpu.memory_space<vmem>>, vector<1x128xf32>
    %27 = vector.broadcast %26 : vector<1x128xf32> to vector<4x128xf32>
    %28 = arith.addf %25, %27 : vector<4x128xf32>
    %29 = arith.mulf %28, %28 : vector<4x128xf32>
    %cst_21 = arith.constant dense<0.000000e+00> : vector<4xf32>
    %30 = vector.multi_reduction <add>, %29, %cst_21 [1] : vector<4x128xf32> to vector<4xf32>
    %31 = vector.shape_cast %30 : vector<4xf32> to vector<4x1xf32>
    %cst_22 = arith.constant 9.99999996E-13 : f32
    %32 = vector.broadcast %cst_22 : f32 to vector<4x1xf32>
    %33 = arith.addf %31, %32 : vector<4x1xf32>
    %34 = math.rsqrt %33 : vector<4x1xf32>
    %35 = vector.broadcast %34 : vector<4x1xf32> to vector<4x128xf32>
    %36 = arith.mulf %28, %35 : vector<4x128xf32>
    %c0_23 = arith.constant 0 : index
    %c0_24 = arith.constant 0 : index
    %37 = vector.load %arg9[%c0_23, %c0_24] : memref<4x128xf32, #tpu.memory_space<vmem>>, vector<4x128xf32>
    tpu.vector_store %arg9[%c0_23, %c0_24], %36 {strides = array<i32>} : memref<4x128xf32, #tpu.memory_space<vmem>>, vector<4x128xf32>,
    return
  }
  func.func @transform_0(%arg0: i32) -> (i32, i32) {
    %c0_i32 = arith.constant 0 : i32
    %c0_i32_0 = arith.constant 0 : i32
    return %arg0, %c0_i32 : i32, i32
  }
  func.func @transform_1(%arg0: i32) -> (i32, i32) {
    %c0_i32 = arith.constant 0 : i32
    %c0_i32_0 = arith.constant 0 : i32
    %c0_i32_1 = arith.constant 0 : i32
    return %c0_i32, %c0_i32_0 : i32, i32
  }
  func.func @transform_2(%arg0: i32) -> (i32, i32) {
    %c0_i32 = arith.constant 0 : i32
    %c0_i32_0 = arith.constant 0 : i32
    %c0_i32_1 = arith.constant 0 : i32
    return %c0_i32, %c0_i32_0 : i32, i32
  }
  func.func @transform_3(%arg0: i32) -> (i32, i32) {
    %c0_i32 = arith.constant 0 : i32
    %c0_i32_0 = arith.constant 0 : i32
    %c0_i32_1 = arith.constant 0 : i32
    return %c0_i32, %c0_i32_0 : i32, i32
  }
  func.func @transform_4(%arg0: i32) -> (i32, i32) {
    %c0_i32 = arith.constant 0 : i32
    %c0_i32_0 = arith.constant 0 : i32
    %c0_i32_1 = arith.constant 0 : i32
    return %c0_i32, %c0_i32_0 : i32, i32
  }
  func.func @transform_5(%arg0: i32) -> (i32, i32) {
    %c0_i32 = arith.constant 0 : i32
    %c0_i32_0 = arith.constant 0 : i32
    %c0_i32_1 = arith.constant 0 : i32
    return %c0_i32, %c0_i32_0 : i32, i32
  }
  func.func @transform_6(%arg0: i32) -> (i32, i32) {
    %c0_i32 = arith.constant 0 : i32
    %c0_i32_0 = arith.constant 0 : i32
    %c0_i32_1 = arith.constant 0 : i32
    return %c0_i32, %c0_i32_0 : i32, i32
  }
  func.func @transform_7(%arg0: i32) -> (i32, i32) {
    %c0_i32 = arith.constant 0 : i32
    %c0_i32_0 = arith.constant 0 : i32
    return %arg0, %c0_i32 : i32, i32
  }
  func.func @transform_8(%arg0: i32) -> (i32, i32) {
    %c0_i32 = arith.constant 0 : i32
    %c0_i32_0 = arith.constant 0 : i32
    return %arg0, %c0_i32 : i32, i32
  }
}

</mosaic_0001>

<llo_original>
// kernel: constu_forward.1
$region0: #{constu_forward.1}
  #allocation0 [shape = 'u32[]', space=smem, size = 0x4, offset = 0x4, fixed_abs, tag = 'smem constant byte address 0x4 - core index']
  #allocation1 [shape = 'u32[144,128]{1,0:T(1,128)}', space=vmem, size = 0x12000, scoped, tag = 'internal scratch']
  %s0 = inlined_call_operand.vmem [shape: bf16[1024,36], index: 0, kind: input, shape index: {}]
  %s1 = inlined_call_operand.vmem [shape: bf16[36,128], index: 1, kind: input, shape index: {}]
  %s2 = inlined_call_operand.vmem [shape: f32[1,128], index: 2, kind: input, shape index: {}]
  %s3 = inlined_call_operand.vmem [shape: bf16[128,256], index: 3, kind: input, shape index: {}]
  %s4 = inlined_call_operand.vmem [shape: f32[1,256], index: 4, kind: input, shape index: {}]
  %s5 = inlined_call_operand.vmem [shape: bf16[128,128], index: 5, kind: input, shape index: {}]
  %s6 = inlined_call_operand.vmem [shape: f32[1,128], index: 6, kind: input, shape index: {}]
  %s7 = inlined_call_operand.vmem [shape: f32[4,128], index: 7, kind: output, shape index: {0}]
  %s8 = inlined_call_operand.vmem [shape: f32[4,128], index: 8, kind: output, shape index: {1}]
  %9 = xla_tuple %s7, %s8
  %s10 = sld [smem:[#allocation0]]
  $region46: #{constu_forward.1} parent=0
    _
  %s12 = ssub.s32 1, %s10
  %s13 = scalar_select 0, %s12, %s10
  // Predicated region
  $region2: #{constu_forward.1} parent=0 // pred_check
    _
  $region3: #{constu_forward.1} parent=0 // pred_check_branch
    %15 = sbr.rel (0) target = $region5
  $region4: #{constu_forward.1} parent=0 // pred_region
    _
  $region5: #{constu_forward.1} parent=0 // pred_fallthru
    _
  // Predicated region
  $region6: #{constu_forward.1} parent=0 // pred_check
    _
  $region7: #{constu_forward.1} parent=0 // pred_check_branch
    %17 = sbr.rel (0) target = $region9
  $region8: #{constu_forward.1} parent=0 // pred_region
    _
  $region9: #{constu_forward.1} parent=0 // pred_fallthru
    _
  // Predicated region
  $region10: #{constu_forward.1} parent=0 // pred_check
    _
  $region11: #{constu_forward.1} parent=0 // pred_check_branch
    %19 = sbr.rel (0) target = $region13
  $region12: #{constu_forward.1} parent=0 // pred_region
    _
  $region13: #{constu_forward.1} parent=0 // pred_fallthru
    _
  // Predicated region
  $region14: #{constu_forward.1} parent=0 // pred_check
    _
  $region15: #{constu_forward.1} parent=0 // pred_check_branch
    %21 = sbr.rel (0) target = $region17
  $region16: #{constu_forward.1} parent=0 // pred_region
    _
  $region17: #{constu_forward.1} parent=0 // pred_fallthru
    _
  // Predicated region
  $region18: #{constu_forward.1} parent=0 // pred_check
    _
  $region19: #{constu_forward.1} parent=0 // pred_check_branch
    %23 = sbr.rel (0) target = $region21
  $region20: #{constu_forward.1} parent=0 // pred_region
    _
  $region21: #{constu_forward.1} parent=0 // pred_fallthru
    _
  // Predicated region
  $region22: #{constu_forward.1} parent=0 // pred_check
    _
  $region23: #{constu_forward.1} parent=0 // pred_check_branch
    %25 = sbr.rel (0) target = $region25
  $region24: #{constu_forward.1} parent=0 // pred_region
    _
  $region25: #{constu_forward.1} parent=0 // pred_fallthru
    _
  // Predicated region
  $region26: #{constu_forward.1} parent=0 // pred_check
    _
  $region27: #{constu_forward.1} parent=0 // pred_check_branch
    %27 = sbr.rel (0) target = $region29
  $region28: #{constu_forward.1} parent=0 // pred_region
    _
  $region29: #{constu_forward.1} parent=0 // pred_fallthru
    _
  %v29 = vld [vmem:[%s0] sm:$0xf]
  %v30 = vld [vmem:[%s0 + $0x4] sm:$0xf]
  %v31 = vld [vmem:[%s0 + $0x8] sm:$0xf]
  %v32 = vld [vmem:[%s0 + $0xc] sm:$0xf]
  %v33 = vld [vmem:[%s0 + $0x10] sm:$0xf]
  %v34 = vld [vmem:[%s0 + $0x14] sm:$0xf]
  %v35 = vld [vmem:[%s0 + $0x18] sm:$0xf]
  %v36 = vld [vmem:[%s0 + $0x1c] sm:$0xf]
  %v37 = vld [vmem:[%s0 + $0x20] sm:$0xf]
  %v38 = vld [vmem:[%s0 + $0x24] sm:$0xf]
  %v39 = vld [vmem:[%s0 + $0x28] sm:$0xf]
  %v40 = vld [vmem:[%s0 + $0x2c] sm:$0xf]
  %v41 = vld [vmem:[%s0 + $0x30] sm:$0xf]
  %v42 = vld [vmem:[%s0 + $0x34] sm:$0xf]
  %v43 = vld [vmem:[%s0 + $0x38] sm:$0xf]
  %v44 = vld [vmem:[%s0 + $0x3c] sm:$0xf]
  %v45 = vld [vmem:[%s0 + $0x40] sm:$0xf]
  %v46 = vld [vmem:[%s0 + $0x44] sm:$0xf]
  %v47 = vld [vmem:[%s0 + $0x48] sm:$0xf]
  %v48 = vld [vmem:[%s0 + $0x4c] sm:$0xf]
  %v49 = vld [vmem:[%s0 + $0x50] sm:$0xf]
  %v50 = vld [vmem:[%s0 + $0x54] sm:$0xf]
  %v51 = vld [vmem:[%s0 + $0x58] sm:$0xf]
  %v52 = vld [vmem:[%s0 + $0x5c] sm:$0xf]
  %v53 = vld [vmem:[%s0 + $0x60] sm:$0xf]
  %v54 = vld [vmem:[%s0 + $0x64] sm:$0xf]
  %v55 = vld [vmem:[%s0 + $0x68] sm:$0xf]
  %v56 = vld [vmem:[%s0 + $0x6c] sm:$0xf]
  %v57 = vld [vmem:[%s0 + $0x70] sm:$0xf]
  %v58 = vld [vmem:[%s0 + $0x74] sm:$0xf]
  %v59 = vld [vmem:[%s0 + $0x78] sm:$0xf]
  %v60 = vld [vmem:[%s0 + $0x7c] sm:$0xf]
  %v61 = vld [vmem:[%s0 + $0x80] sm:$0xf]
  %v62 = vld [vmem:[%s0 + $0x84] sm:$0xf]
  %v63 = vld [vmem:[%s0 + $0x88] sm:$0xf]
  %v64 = vld [vmem:[%s0 + $0x8c] sm:$0xf]
  %v65 = vld [vmem:[%s0 + $0x90] sm:$0xf]
  %v66 = vld [vmem:[%s0 + $0x94] sm:$0xf]
  %v67 = vld [vmem:[%s0 + $0x98] sm:$0xf]
  %v68 = vld [vmem:[%s0 + $0x9c] sm:$0xf]
  %v69 = vld [vmem:[%s0 + $0xa0] sm:$0xf]
  %v70 = vld [vmem:[%s0 + $0xa4] sm:$0xf]
  %v71 = vld [vmem:[%s0 + $0xa8] sm:$0xf]
  %v72 = vld [vmem:[%s0 + $0xac] sm:$0xf]
  %v73 = vld [vmem:[%s0 + $0xb0] sm:$0xf]
  %v74 = vld [vmem:[%s0 + $0xb4] sm:$0xf]
  %v75 = vld [vmem:[%s0 + $0xb8] sm:$0xf]
  %v76 = vld [vmem:[%s0 + $0xbc] sm:$0xf]
  %v77 = vld [vmem:[%s0 + $0xc0] sm:$0xf]
  %v78 = vld [vmem:[%s0 + $0xc4] sm:$0xf]
  %v79 = vld [vmem:[%s0 + $0xc8] sm:$0xf]
  %v80 = vld [vmem:[%s0 + $0xcc] sm:$0xf]
  %v81 = vld [vmem:[%s0 + $0xd0] sm:$0xf]
  %v82 = vld [vmem:[%s0 + $0xd4] sm:$0xf]
  %v83 = vld [vmem:[%s0 + $0xd8] sm:$0xf]
  %v84 = vld [vmem:[%s0 + $0xdc] sm:$0xf]
  %v85 = vld [vmem:[%s0 + $0xe0] sm:$0xf]
  %v86 = vld [vmem:[%s0 + $0xe4] sm:$0xf]
  %v87 = vld [vmem:[%s0 + $0xe8] sm:$0xf]
  %v88 = vld [vmem:[%s0 + $0xec] sm:$0xf]
  %v89 = vld [vmem:[%s0 + $0xf0] sm:$0xf]
  %v90 = vld [vmem:[%s0 + $0xf4] sm:$0xf]
  %v91 = vld [vmem:[%s0 + $0xf8] sm:$0xf]
  %v92 = vld [vmem:[%s0 + $0xfc] sm:$0xf]
  %v93 = vld [vmem:[%s0 + $0x100] sm:$0xf]
  %v94 = vld [vmem:[%s0 + $0x104] sm:$0xf]
  %v95 = vld [vmem:[%s0 + $0x108] sm:$0xf]
  %v96 = vld [vmem:[%s0 + $0x10c] sm:$0xf]
  %v97 = vld [vmem:[%s0 + $0x110] sm:$0xf]
  %v98 = vld [vmem:[%s0 + $0x114] sm:$0xf]
  %v99 = vld [vmem:[%s0 + $0x118] sm:$0xf]
  %v100 = vld [vmem:[%s0 + $0x11c] sm:$0xf]
  %v101 = vld [vmem:[%s0 + $0x120] sm:$0xf]
  %v102 = vld [vmem:[%s0 + $0x124] sm:$0xf]
  %v103 = vld [vmem:[%s0 + $0x128] sm:$0xf]
  %v104 = vld [vmem:[%s0 + $0x12c] sm:$0xf]
  %v105 = vld [vmem:[%s0 + $0x130] sm:$0xf]
  %v106 = vld [vmem:[%s0 + $0x134] sm:$0xf]
  %v107 = vld [vmem:[%s0 + $0x138] sm:$0xf]
  %v108 = vld [vmem:[%s0 + $0x13c] sm:$0xf]
  %v109 = vld [vmem:[%s0 + $0x140] sm:$0xf]
  %v110 = vld [vmem:[%s0 + $0x144] sm:$0xf]
  %v111 = vld [vmem:[%s0 + $0x148] sm:$0xf]
  %v112 = vld [vmem:[%s0 + $0x14c] sm:$0xf]
  %v113 = vld [vmem:[%s0 + $0x150] sm:$0xf]
  %v114 = vld [vmem:[%s0 + $0x154] sm:$0xf]
  %v115 = vld [vmem:[%s0 + $0x158] sm:$0xf]
  %v116 = vld [vmem:[%s0 + $0x15c] sm:$0xf]
  %v117 = vld [vmem:[%s0 + $0x160] sm:$0xf]
  %v118 = vld [vmem:[%s0 + $0x164] sm:$0xf]
  %v119 = vld [vmem:[%s0 + $0x168] sm:$0xf]
  %v120 = vld [vmem:[%s0 + $0x16c] sm:$0xf]
  %v121 = vld [vmem:[%s0 + $0x170] sm:$0xf]
  %v122 = vld [vmem:[%s0 + $0x174] sm:$0xf]
  %v123 = vld [vmem:[%s0 + $0x178] sm:$0xf]
  %v124 = vld [vmem:[%s0 + $0x17c] sm:$0xf]
  %v125 = vld [vmem:[%s0 + $0x180] sm:$0xf]
  %v126 = vld [vmem:[%s0 + $0x184] sm:$0xf]
  %v127 = vld [vmem:[%s0 + $0x188] sm:$0xf]
  %v128 = vld [vmem:[%s0 + $0x18c] sm:$0xf]
  %v129 = vld [vmem:[%s0 + $0x190] sm:$0xf]
  %v130 = vld [vmem:[%s0 + $0x194] sm:$0xf]
  %v131 = vld [vmem:[%s0 + $0x198] sm:$0xf]
  %v132 = vld [vmem:[%s0 + $0x19c] sm:$0xf]
  %v133 = vld [vmem:[%s0 + $0x1a0] sm:$0xf]
  %v134 = vld [vmem:[%s0 + $0x1a4] sm:$0xf]
  %v135 = vld [vmem:[%s0 + $0x1a8] sm:$0xf]
  %v136 = vld [vmem:[%s0 + $0x1ac] sm:$0xf]
  %v137 = vld [vmem:[%s0 + $0x1b0] sm:$0xf]
  %v138 = vld [vmem:[%s0 + $0x1b4] sm:$0xf]
  %v139 = vld [vmem:[%s0 + $0x1b8] sm:$0xf]
  %v140 = vld [vmem:[%s0 + $0x1bc] sm:$0xf]
  %v141 = vld [vmem:[%s0 + $0x1c0] sm:$0xf]
  %v142 = vld [vmem:[%s0 + $0x1c4] sm:$0xf]
  %v143 = vld [vmem:[%s0 + $0x1c8] sm:$0xf]
  %v144 = vld [vmem:[%s0 + $0x1cc] sm:$0xf]
  %v145 = vld [vmem:[%s0 + $0x1d0] sm:$0xf]
  %v146 = vld [vmem:[%s0 + $0x1d4] sm:$0xf]
  %v147 = vld [vmem:[%s0 + $0x1d8] sm:$0xf]
  %v148 = vld [vmem:[%s0 + $0x1dc] sm:$0xf]
  %v149 = vld [vmem:[%s0 + $0x1e0] sm:$0xf]
  %v150 = vld [vmem:[%s0 + $0x1e4] sm:$0xf]
  %v151 = vld [vmem:[%s0 + $0x1e8] sm:$0xf]
  %v152 = vld [vmem:[%s0 + $0x1ec] sm:$0xf]
  %v153 = vld [vmem:[%s0 + $0x1f0] sm:$0xf]
  %v154 = vld [vmem:[%s0 + $0x1f4] sm:$0xf]
  %v155 = vld [vmem:[%s0 + $0x1f8] sm:$0xf]
  %v156 = vld [vmem:[%s0 + $0x1fc] sm:$0xf]
  %v157 = vld [vmem:[%s1] sm:$0xf]
  %v158 = vld [vmem:[%s1 + $0x4] sm:$0xf]
  %v159 = vld [vmem:[%s1 + $0x8] sm:$0xf]
  %v160 = vld [vmem:[%s1 + $0xc] sm:$0xf]
  %v161 = vld [vmem:[%s1 + $0x10] sm:$0x3]
  %v162 = vld [vmem:[%s2] sm:$0x1]
  %v164 = vlaneseq
  %v165 = vshrl.u32 %v164, 7
  %v166 = vsub.s32 0, %v165
  %v167 = vrot.slane %v162, %v166
  %v297 = vunpack.c.l.b16 %v29
  %v298 = vunpack.c.l.b16 %v30
  %v299 = vunpack.c.l.b16 %v31
  %v300 = vunpack.c.l.b16 %v32
  %v301 = vunpack.c.l.b16 %v33
  %v302 = vunpack.c.l.b16 %v34
  %v303 = vunpack.c.l.b16 %v35
  %v304 = vunpack.c.l.b16 %v36
  %v305 = vunpack.c.l.b16 %v37
  %v306 = vunpack.c.l.b16 %v38
  %v307 = vunpack.c.l.b16 %v39
  %v308 = vunpack.c.l.b16 %v40
  %v309 = vunpack.c.l.b16 %v41
  %v310 = vunpack.c.l.b16 %v42
  %v311 = vunpack.c.l.b16 %v43
  %v312 = vunpack.c.l.b16 %v44
  %v313 = vunpack.c.l.b16 %v45
  %v314 = vunpack.c.l.b16 %v46
  %v315 = vunpack.c.l.b16 %v47
  %v316 = vunpack.c.l.b16 %v48
  %v317 = vunpack.c.l.b16 %v49
  %v318 = vunpack.c.l.b16 %v50
  %v319 = vunpack.c.l.b16 %v51
  %v320 = vunpack.c.l.b16 %v52
  %v321 = vunpack.c.l.b16 %v53
  %v322 = vunpack.c.l.b16 %v54
  %v323 = vunpack.c.l.b16 %v55
  %v324 = vunpack.c.l.b16 %v56
  %v325 = vunpack.c.l.b16 %v57
  %v326 = vunpack.c.l.b16 %v58
  %v327 = vunpack.c.l.b16 %v59
  %v328 = vunpack.c.l.b16 %v60
  %v329 = vunpack.c.l.b16 %v61
  %v330 = vunpack.c.l.b16 %v62
  %v331 = vunpack.c.l.b16 %v63
  %v332 = vunpack.c.l.b16 %v64
  %v333 = vunpack.c.l.b16 %v65
  %v334 = vunpack.c.l.b16 %v66
  %v335 = vunpack.c.l.b16 %v67
  %v336 = vunpack.c.l.b16 %v68
  %v337 = vunpack.c.l.b16 %v69
  %v338 = vunpack.c.l.b16 %v70
  %v339 = vunpack.c.l.b16 %v71
  %v340 = vunpack.c.l.b16 %v72
  %v341 = vunpack.c.l.b16 %v73
  %v342 = vunpack.c.l.b16 %v74
  %v343 = vunpack.c.l.b16 %v75
  %v344 = vunpack.c.l.b16 %v76
  %v345 = vunpack.c.l.b16 %v77
  %v346 = vunpack.c.l.b16 %v78
  %v347 = vunpack.c.l.b16 %v79
  %v348 = vunpack.c.l.b16 %v80
  %v349 = vunpack.c.l.b16 %v81
  %v350 = vunpack.c.l.b16 %v82
  %v351 = vunpack.c.l.b16 %v83
  %v352 = vunpack.c.l.b16 %v84
  %v353 = vunpack.c.l.b16 %v85
  %v354 = vunpack.c.l.b16 %v86
  %v355 = vunpack.c.l.b16 %v87
  %v356 = vunpack.c.l.b16 %v88
  %v357 = vunpack.c.l.b16 %v89
  %v358 = vunpack.c.l.b16 %v90
  %v359 = vunpack.c.l.b16 %v91
  %v360 = vunpack.c.l.b16 %v92
  %v361 = vunpack.c.l.b16 %v93
  %v362 = vunpack.c.l.b16 %v94
  %v363 = vunpack.c.l.b16 %v95
  %v364 = vunpack.c.l.b16 %v96
  %v365 = vunpack.c.l.b16 %v97
  %v366 = vunpack.c.l.b16 %v98
  %v367 = vunpack.c.l.b16 %v99
  %v368 = vunpack.c.l.b16 %v100
  %v369 = vunpack.c.l.b16 %v101
  %v370 = vunpack.c.l.b16 %v102
  %v371 = vunpack.c.l.b16 %v103
  %v372 = vunpack.c.l.b16 %v104
  %v373 = vunpack.c.l.b16 %v105
  %v374 = vunpack.c.l.b16 %v106
  %v375 = vunpack.c.l.b16 %v107
  %v376 = vunpack.c.l.b16 %v108
  %v377 = vunpack.c.l.b16 %v109
  %v378 = vunpack.c.l.b16 %v110
  %v379 = vunpack.c.l.b16 %v111
  %v380 = vunpack.c.l.b16 %v112
  %v381 = vunpack.c.l.b16 %v113
  %v382 = vunpack.c.l.b16 %v114
  %v383 = vunpack.c.l.b16 %v115
  %v384 = vunpack.c.l.b16 %v116
  %v385 = vunpack.c.l.b16 %v117
  %v386 = vunpack.c.l.b16 %v118
  %v387 = vunpack.c.l.b16 %v119
  %v388 = vunpack.c.l.b16 %v120
  %v389 = vunpack.c.l.b16 %v121
  %v390 = vunpack.c.l.b16 %v122
  %v391 = vunpack.c.l.b16 %v123
  %v392 = vunpack.c.l.b16 %v124
  %v393 = vunpack.c.l.b16 %v125
  %v394 = vunpack.c.l.b16 %v126
  %v395 = vunpack.c.l.b16 %v127
  %v396 = vunpack.c.l.b16 %v128
  %v397 = vunpack.c.l.b16 %v129
  %v398 = vunpack.c.l.b16 %v130
  %v399 = vunpack.c.l.b16 %v131
  %v400 = vunpack.c.l.b16 %v132
  %v401 = vunpack.c.l.b16 %v133
  %v402 = vunpack.c.l.b16 %v134
  %v403 = vunpack.c.l.b16 %v135
  %v404 = vunpack.c.l.b16 %v136
  %v405 = vunpack.c.l.b16 %v137
  %v406 = vunpack.c.l.b16 %v138
  %v407 = vunpack.c.l.b16 %v139
  %v408 = vunpack.c.l.b16 %v140
  %v409 = vunpack.c.l.b16 %v141
  %v410 = vunpack.c.l.b16 %v142
  %v411 = vunpack.c.l.b16 %v143
  %v412 = vunpack.c.l.b16 %v144
  %v413 = vunpack.c.l.b16 %v145
  %v414 = vunpack.c.l.b16 %v146
  %v415 = vunpack.c.l.b16 %v147
  %v416 = vunpack.c.l.b16 %v148
  %v417 = vunpack.c.l.b16 %v149
  %v418 = vunpack.c.l.b16 %v150
  %v419 = vunpack.c.l.b16 %v151
  %v420 = vunpack.c.l.b16 %v152
  %v421 = vunpack.c.l.b16 %v153
  %v422 = vunpack.c.l.b16 %v154
  %v423 = vunpack.c.l.b16 %v155
  %v424 = vunpack.c.l.b16 %v156
  %v425 = vpack.c.b16 %v298, %v297
  %v426 = vpack.c.b16 %v300, %v299
  %v427 = vpack.c.b16 %v302, %v301
  %v428 = vpack.c.b16 %v304, %v303
  %v429 = vpack.c.b16 %v306, %v305
  %v430 = vpack.c.b16 %v308, %v307
  %v431 = vpack.c.b16 %v310, %v309
  %v432 = vpack.c.b16 %v312, %v311
  %v433 = vpack.c.b16 %v314, %v313
  %v434 = vpack.c.b16 %v316, %v315
  %v435 = vpack.c.b16 %v318, %v317
  %v436 = vpack.c.b16 %v320, %v319
  %v437 = vpack.c.b16 %v322, %v321
  %v438 = vpack.c.b16 %v324, %v323
  %v439 = vpack.c.b16 %v326, %v325
  %v440 = vpack.c.b16 %v328, %v327
  %v441 = vpack.c.b16 %v330, %v329
  %v442 = vpack.c.b16 %v332, %v331
  %v443 = vpack.c.b16 %v334, %v333
  %v444 = vpack.c.b16 %v336, %v335
  %v445 = vpack.c.b16 %v338, %v337
  %v446 = vpack.c.b16 %v340, %v339
  %v447 = vpack.c.b16 %v342, %v341
  %v448 = vpack.c.b16 %v344, %v343
  %v449 = vpack.c.b16 %v346, %v345
  %v450 = vpack.c.b16 %v348, %v347
  %v451 = vpack.c.b16 %v350, %v349
  %v452 = vpack.c.b16 %v352, %v351
  %v453 = vpack.c.b16 %v354, %v353
  %v454 = vpack.c.b16 %v356, %v355
  %v455 = vpack.c.b16 %v358, %v357
  %v456 = vpack.c.b16 %v360, %v359
  %v457 = vpack.c.b16 %v362, %v361
  %v458 = vpack.c.b16 %v364, %v363
  %v459 = vpack.c.b16 %v366, %v365
  %v460 = vpack.c.b16 %v368, %v367
  %v461 = vpack.c.b16 %v370, %v369
  %v462 = vpack.c.b16 %v372, %v371
  %v463 = vpack.c.b16 %v374, %v373
  %v464 = vpack.c.b16 %v376, %v375
  %v465 = vpack.c.b16 %v378, %v377
  %v466 = vpack.c.b16 %v380, %v379
  %v467 = vpack.c.b16 %v382, %v381
  %v468 = vpack.c.b16 %v384, %v383
  %v469 = vpack.c.b16 %v386, %v385
  %v470 = vpack.c.b16 %v388, %v387
  %v471 = vpack.c.b16 %v390, %v389
  %v472 = vpack.c.b16 %v392, %v391
  %v473 = vpack.c.b16 %v394, %v393
  %v474 = vpack.c.b16 %v396, %v395
  %v475 = vpack.c.b16 %v398, %v397
  %v476 = vpack.c.b16 %v400, %v399
  %v477 = vpack.c.b16 %v402, %v401
  %v478 = vpack.c.b16 %v404, %v403
  %v479 = vpack.c.b16 %v406, %v405
  %v480 = vpack.c.b16 %v408, %v407
  %v481 = vpack.c.b16 %v410, %v409
  %v482 = vpack.c.b16 %v412, %v411
  %v483 = vpack.c.b16 %v414, %v413
  %v484 = vpack.c.b16 %v416, %v415
  %v485 = vpack.c.b16 %v418, %v417
  %v486 = vpack.c.b16 %v420, %v419
  %v487 = vpack.c.b16 %v422, %v421
  %v488 = vpack.c.b16 %v424, %v423
  %v494 = vunpack.c.l.b16 %v157
  %v495 = vunpack.c.l.b16 %v158
  %v496 = vunpack.c.l.b16 %v159
  %v497 = vunpack.c.l.b16 %v160
  %v498 = vunpack.c.l.b16 %v161
  %v499 = vpack.c.b16 %v495, %v494
  %v500 = vpack.c.b16 %v497, %v496
  %v501 = vpack.c.b16 %v498, %v498
  %vm504 = vcmask 293888
  %v506 = vsel %vm504, %v425, 0
  %v509 = vsel %vm504, %v426, 0
  %v512 = vsel %vm504, %v427, 0
  %v515 = vsel %vm504, %v428, 0
  %v518 = vsel %vm504, %v429, 0
  %v521 = vsel %vm504, %v430, 0
  %v524 = vsel %vm504, %v431, 0
  %v527 = vsel %vm504, %v432, 0
  %v530 = vsel %vm504, %v433, 0
  %v533 = vsel %vm504, %v434, 0
  %v536 = vsel %vm504, %v435, 0
  %v539 = vsel %vm504, %v436, 0
  %v542 = vsel %vm504, %v437, 0
  %v545 = vsel %vm504, %v438, 0
  %v548 = vsel %vm504, %v439, 0
  %v551 = vsel %vm504, %v440, 0
  %v554 = vsel %vm504, %v441, 0
  %v557 = vsel %vm504, %v442, 0
  %v560 = vsel %vm504, %v443, 0
  %v563 = vsel %vm504, %v444, 0
  %v566 = vsel %vm504, %v445, 0
  %v569 = vsel %vm504, %v446, 0
  %v572 = vsel %vm504, %v447, 0
  %v575 = vsel %vm504, %v448, 0
  %v578 = vsel %vm504, %v449, 0
  %v581 = vsel %vm504, %v450, 0
  %v584 = vsel %vm504, %v451, 0
  %v587 = vsel %vm504, %v452, 0
  %v590 = vsel %vm504, %v453, 0
  %v593 = vsel %vm504, %v454, 0
  %v596 = vsel %vm504, %v455, 0
  %v599 = vsel %vm504, %v456, 0
  %v602 = vsel %vm504, %v457, 0
  %v605 = vsel %vm504, %v458, 0
  %v608 = vsel %vm504, %v459, 0
  %v611 = vsel %vm504, %v460, 0
  %v614 = vsel %vm504, %v461, 0
  %v617 = vsel %vm504, %v462, 0
  %v620 = vsel %vm504, %v463, 0
  %v623 = vsel %vm504, %v464, 0
  %v626 = vsel %vm504, %v465, 0
  %v629 = vsel %vm504, %v466, 0
  %v632 = vsel %vm504, %v467, 0
  %v635 = vsel %vm504, %v468, 0
  %v638 = vsel %vm504, %v469, 0
  %v641 = vsel %vm504, %v470, 0
  %v644 = vsel %vm504, %v471, 0
  %v647 = vsel %vm504, %v472, 0
  %v650 = vsel %vm504, %v473, 0
  %v653 = vsel %vm504, %v474, 0
  %v656 = vsel %vm504, %v475, 0
  %v659 = vsel %vm504, %v476, 0
  %v662 = vsel %vm504, %v477, 0
  %v665 = vsel %vm504, %v478, 0
  %v668 = vsel %vm504, %v479, 0
  %v671 = vsel %vm504, %v480, 0
  %v674 = vsel %vm504, %v481, 0
  %v677 = vsel %vm504, %v482, 0
  %v680 = vsel %vm504, %v483, 0
  %v683 = vsel %vm504, %v484, 0
  %v686 = vsel %vm504, %v485, 0
  %v689 = vsel %vm504, %v486, 0
  %v692 = vsel %vm504, %v487, 0
  %v695 = vsel %vm504, %v488, 0
  %vm697 = vcmask 1041408
  %v699 = vsel %vm697, %v501, 0
  %701 = vmatprep.subr.bf16.mxu0 0
  %702 = vmatpush1.bf16.msra.mxu0 %v499
  %703 = vmatprep.subr.bf16.mxu0 0
  %704 = vmatpush1.bf16.msra.mxu0 %v500
  %705 = vmatprep.subr.bf16.mxu0 0
  %706 = vmatpush1.bf16.msra.mxu0 %v699
  %707 = vmatprep.subr.bf16.mxu0 0
  %708 = vmatpush1.bf16.msra.mxu0 0
  %709 = vmatprep.subr.bf16.mxu0 0
  %710 = vmatpush1.bf16.msra.mxu0 0
  %711 = vmatprep.subr.bf16.mxu0 0
  %712 = vmatpush1.bf16.msra.mxu0 0
  %713 = vmatprep.subr.bf16.mxu0 0
  %714 = vmatpush1.bf16.msra.mxu0 0
  %715 = vmatprep.subr.bf16.mxu0 0
  %716 = vmatpush1.bf16.msra.mxu0 0
  %717 = vmatprep.subr.bf16.mxu0 0
  %718 = vmatpush1.bf16.msra.mxu0 0
  %719 = vmatprep.subr.bf16.mxu0 0
  %720 = vmatpush1.bf16.msra.mxu0 0
  %721 = vmatprep.subr.bf16.mxu0 0
  %722 = vmatpush1.bf16.msra.mxu0 0
  %723 = vmatprep.subr.bf16.mxu0 0
  %724 = vmatpush1.bf16.msra.mxu0 0
  %725 = vmatprep.subr.bf16.mxu0 0
  %726 = vmatpush1.bf16.msra.mxu0 0
  %727 = vmatprep.subr.bf16.mxu0 0
  %728 = vmatpush1.bf16.msra.mxu0 0
  %729 = vmatprep.subr.bf16.mxu0 0
  %730 = vmatpush1.bf16.msra.mxu0 0
  %731 = vmatprep.subr.bf16.mxu0 0
  %732 = vmatpush1.bf16.msra.mxu0 0
  %733 = vmatprep.mubr.bf16.mxu0 0
  %734 = vmatmul.mubr.bf16.gmra.mrb[0].mxu0 %v506
  %v735 = vpop.f32.mrb[0].mxu0
  %v736 = vadd.f32 %v167, %v735
  %v737 = vpop.f32.mrb[0].mxu0
  %v738 = vpop.f32.mrb[0].mxu0
  %v739 = vadd.f32 %v167, %v738
  %v740 = vpop.f32.mrb[0].mxu0
  %741 = vmatprep.mubr.bf16.mxu0 0
  %742 = vmatmul.mubr.bf16.gmra.mrb[0].mxu0 %v509
  %v743 = vpop.f32.mrb[0].mxu0
  %v744 = vadd.f32 %v167, %v743
  %v745 = vpop.f32.mrb[0].mxu0
  %v746 = vpop.f32.mrb[0].mxu0
  %v747 = vadd.f32 %v167, %v746
  %v748 = vpop.f32.mrb[0].mxu0
  %749 = vmatprep.mubr.bf16.mxu0 0
  %750 = vmatmul.mubr.bf16.gmra.mrb[0].mxu0 %v512
  %v751 = vpop.f32.mrb[0].mxu0
  %v752 = vadd.f32 %v167, %v751
  %v753 = vpop.f32.mrb[0].mxu0
  %v754 = vpop.f32.mrb[0].mxu0
  %v755 = vadd.f32 %v167, %v754
  %v756 = vpop.f32.mrb[0].mxu0
  %757 = vmatprep.mubr.bf16.mxu0 0
  %758 = vmatmul.mubr.bf16.gmra.mrb[0].mxu0 %v515
  %v759 = vpop.f32.mrb[0].mxu0
  %v760 = vadd.f32 %v167, %v759
  %v761 = vpop.f32.mrb[0].mxu0
  %v762 = vpop.f32.mrb[0].mxu0
  %v763 = vadd.f32 %v167, %v762
  %v764 = vpop.f32.mrb[0].mxu0
  %765 = vmatprep.mubr.bf16.mxu0 0
  %766 = vmatmul.mubr.bf16.gmra.mrb[0].mxu0 %v518
  %v767 = vpop.f32.mrb[0].mxu0
  %v768 = vadd.f32 %v167, %v767
  %v769 = vpop.f32.mrb[0].mxu0
  %v770 = vpop.f32.mrb[0].mxu0
  %v771 = vadd.f32 %v167, %v770
  %v772 = vpop.f32.mrb[0].mxu0
  %773 = vmatprep.mubr.bf16.mxu0 0
  %774 = vmatmul.mubr.bf16.gmra.mrb[0].mxu0 %v521
  %v775 = vpop.f32.mrb[0].mxu0
  %v776 = vadd.f32 %v167, %v775
  %v777 = vpop.f32.mrb[0].mxu0
  %v778 = vpop.f32.mrb[0].mxu0
  %v779 = vadd.f32 %v167, %v778
  %v780 = vpop.f32.mrb[0].mxu0
  %781 = vmatprep.mubr.bf16.mxu0 0
  %782 = vmatmul.mubr.bf16.gmra.mrb[0].mxu0 %v524
  %v783 = vpop.f32.mrb[0].mxu0
  %v784 = vadd.f32 %v167, %v783
  %v785 = vpop.f32.mrb[0].mxu0
  %v786 = vpop.f32.mrb[0].mxu0
  %v787 = vadd.f32 %v167, %v786
  %v788 = vpop.f32.mrb[0].mxu0
  %789 = vmatprep.mubr.bf16.mxu0 0
  %790 = vmatmul.mubr.bf16.gmra.mrb[0].mxu0 %v527
  %v791 = vpop.f32.mrb[0].mxu0
  %v792 = vadd.f32 %v167, %v791
  %v793 = vpop.f32.mrb[0].mxu0
  %v794 = vpop.f32.mrb[0].mxu0
  %v795 = vadd.f32 %v167, %v794
  %v796 = vpop.f32.mrb[0].mxu0
  %797 = vmatprep.mubr.bf16.mxu0 0
  %798 = vmatmul.mubr.bf16.gmra.mrb[0].mxu0 %v530
  %v799 = vpop.f32.mrb[0].mxu0
  %v800 = vadd.f32 %v167, %v799
  %v801 = vpop.f32.mrb[0].mxu0
  %v802 = vpop.f32.mrb[0].mxu0
  %v803 = vadd.f32 %v167, %v802
  %v804 = vpop.f32.mrb[0].mxu0
  %805 = vmatprep.mubr.bf16.mxu0 0
  %806 = vmatmul.mubr.bf16.gmra.mrb[0].mxu0 %v533
  %v807 = vpop.f32.mrb[0].mxu0
  %v808 = vadd.f32 %v167, %v807
  %v809 = vpop.f32.mrb[0].mxu0
  %v810 = vpop.f32.mrb[0].mxu0
  %v811 = vadd.f32 %v167, %v810
  %v812 = vpop.f32.mrb[0].mxu0
  %813 = vmatprep.mubr.bf16.mxu0 0
  %814 = vmatmul.mubr.bf16.gmra.mrb[0].mxu0 %v536
  %v815 = vpop.f32.mrb[0].mxu0
  %v816 = vadd.f32 %v167, %v815
  %v817 = vpop.f32.mrb[0].mxu0
  %v818 = vpop.f32.mrb[0].mxu0
  %v819 = vadd.f32 %v167, %v818
  %v820 = vpop.f32.mrb[0].mxu0
  %821 = vmatprep.mubr.bf16.mxu0 0
  %822 = vmatmul.mubr.bf16.gmra.mrb[0].mxu0 %v539
  %v823 = vpop.f32.mrb[0].mxu0
  %v824 = vadd.f32 %v167, %v823
  %v825 = vpop.f32.mrb[0].mxu0
  %v826 = vpop.f32.mrb[0].mxu0
  %v827 = vadd.f32 %v167, %v826
  %v828 = vpop.f32.mrb[0].mxu0
  %829 = vmatprep.mubr.bf16.mxu0 0
  %830 = vmatmul.mubr.bf16.gmra.mrb[0].mxu0 %v542
  %v831 = vpop.f32.mrb[0].mxu0
  %v832 = vadd.f32 %v167, %v831
  %v833 = vpop.f32.mrb[0].mxu0
  %v834 = vpop.f32.mrb[0].mxu0
  %v835 = vadd.f32 %v167, %v834
  %v836 = vpop.f32.mrb[0].mxu0
  %837 = vmatprep.mubr.bf16.mxu0 0
  %838 = vmatmul.mubr.bf16.gmra.mrb[0].mxu0 %v545
  %v839 = vpop.f32.mrb[0].mxu0
  %v840 = vadd.f32 %v167, %v839
  %v841 = vpop.f32.mrb[0].mxu0
  %v842 = vpop.f32.mrb[0].mxu0
  %v843 = vadd.f32 %v167, %v842
  %v844 = vpop.f32.mrb[0].mxu0
  %845 = vmatprep.mubr.bf16.mxu0 0
  %846 = vmatmul.mubr.bf16.gmra.mrb[0].mxu0 %v548
  %v847 = vpop.f32.mrb[0].mxu0
  %v848 = vadd.f32 %v167, %v847
  %v849 = vpop.f32.mrb[0].mxu0
  %v850 = vpop.f32.mrb[0].mxu0
  %v851 = vadd.f32 %v167, %v850
  %v852 = vpop.f32.mrb[0].mxu0
  %853 = vmatprep.mubr.bf16.mxu0 0
  %854 = vmatmul.mubr.bf16.gmra.mrb[0].mxu0 %v551
  %v855 = vpop.f32.mrb[0].mxu0
  %v856 = vadd.f32 %v167, %v855
  %v857 = vpop.f32.mrb[0].mxu0
  %v858 = vpop.f32.mrb[0].mxu0
  %v859 = vadd.f32 %v167, %v858
  %v860 = vpop.f32.mrb[0].mxu0
  %861 = vmatprep.mubr.bf16.mxu0 0
  %862 = vmatmul.mubr.bf16.gmra.mrb[0].mxu0 %v554
  %v863 = vpop.f32.mrb[0].mxu0
  %v864 = vadd.f32 %v167, %v863
  %v865 = vpop.f32.mrb[0].mxu0
  %v866 = vpop.f32.mrb[0].mxu0
  %v867 = vadd.f32 %v167, %v866
  %v868 = vpop.f32.mrb[0].mxu0
  %869 = vmatprep.mubr.bf16.mxu0 0
  %870 = vmatmul.mubr.bf16.gmra.mrb[0].mxu0 %v557
  %v871 = vpop.f32.mrb[0].mxu0
  %v872 = vadd.f32 %v167, %v871
  %v873 = vpop.f32.mrb[0].mxu0
  %v874 = vpop.f32.mrb[0].mxu0
  %v875 = vadd.f32 %v167, %v874
  %v876 = vpop.f32.mrb[0].mxu0
  %877 = vmatprep.mubr.bf16.mxu0 0
  %878 = vmatmul.mubr.bf16.gmra.mrb[0].mxu0 %v560
  %v879 = vpop.f32.mrb[0].mxu0
  %v880 = vadd.f32 %v167, %v879
  %v881 = vpop.f32.mrb[0].mxu0
  %v882 = vpop.f32.mrb[0].mxu0
  %v883 = vadd.f32 %v167, %v882
  %v884 = vpop.f32.mrb[0].mxu0
  %885 = vmatprep.mubr.bf16.mxu0 0
  %886 = vmatmul.mubr.bf16.gmra.mrb[0].mxu0 %v563
  %v887 = vpop.f32.mrb[0].mxu0
  %v888 = vadd.f32 %v167, %v887
  %v889 = vpop.f32.mrb[0].mxu0
  %v890 = vpop.f32.mrb[0].mxu0
  %v891 = vadd.f32 %v167, %v890
  %v892 = vpop.f32.mrb[0].mxu0
  %893 = vmatprep.mubr.bf16.mxu0 0
  %894 = vmatmul.mubr.bf16.gmra.mrb[0].mxu0 %v566
  %v895 = vpop.f32.mrb[0].mxu0
  %v896 = vadd.f32 %v167, %v895
  %v897 = vpop.f32.mrb[0].mxu0
  %v898 = vpop.f32.mrb[0].mxu0
  %v899 = vadd.f32 %v167, %v898
  %v900 = vpop.f32.mrb[0].mxu0
  %901 = vmatprep.mubr.bf16.mxu0 0
  %902 = vmatmul.mubr.bf16.gmra.mrb[0].mxu0 %v569
  %v903 = vpop.f32.mrb[0].mxu0
  %v904 = vadd.f32 %v167, %v903
  %v905 = vpop.f32.mrb[0].mxu0
  %v906 = vpop.f32.mrb[0].mxu0
  %v907 = vadd.f32 %v167, %v906
  %v908 = vpop.f32.mrb[0].mxu0
  %909 = vmatprep.mubr.bf16.mxu0 0
  %910 = vmatmul.mubr.bf16.gmra.mrb[0].mxu0 %v572
  %v911 = vpop.f32.mrb[0].mxu0
  %v912 = vadd.f32 %v167, %v911
  %v913 = vpop.f32.mrb[0].mxu0
  %v914 = vpop.f32.mrb[0].mxu0
  %v915 = vadd.f32 %v167, %v914
  %v916 = vpop.f32.mrb[0].mxu0
  %917 = vmatprep.mubr.bf16.mxu0 0
  %918 = vmatmul.mubr.bf16.gmra.mrb[0].mxu0 %v575
  %v919 = vpop.f32.mrb[0].mxu0
  %v920 = vadd.f32 %v167, %v919
  %v921 = vpop.f32.mrb[0].mxu0
  %v922 = vpop.f32.mrb[0].mxu0
  %v923 = vadd.f32 %v167, %v922
  %v924 = vpop.f32.mrb[0].mxu0
  %925 = vmatprep.mubr.bf16.mxu0 0
  %926 = vmatmul.mubr.bf16.gmra.mrb[0].mxu0 %v578
  %v927 = vpop.f32.mrb[0].mxu0
  %v928 = vadd.f32 %v167, %v927
  %v929 = vpop.f32.mrb[0].mxu0
  %v930 = vpop.f32.mrb[0].mxu0
  %v931 = vadd.f32 %v167, %v930
  %v932 = vpop.f32.mrb[0].mxu0
  %933 = vmatprep.mubr.bf16.mxu0 0
  %934 = vmatmul.mubr.bf16.gmra.mrb[0].mxu0 %v581
  %v935 = vpop.f32.mrb[0].mxu0
  %v936 = vadd.f32 %v167, %v935
  %v937 = vpop.f32.mrb[0].mxu0
  %v938 = vpop.f32.mrb[0].mxu0
  %v939 = vadd.f32 %v167, %v938
  %v940 = vpop.f32.mrb[0].mxu0
  %941 = vmatprep.mubr.bf16.mxu0 0
  %942 = vmatmul.mubr.bf16.gmra.mrb[0].mxu0 %v584
  %v943 = vpop.f32.mrb[0].mxu0
  %v944 = vadd.f32 %v167, %v943
  %v945 = vpop.f32.mrb[0].mxu0
  %v946 = vpop.f32.mrb[0].mxu0
  %v947 = vadd.f32 %v167, %v946
  %v948 = vpop.f32.mrb[0].mxu0
  %949 = vmatprep.mubr.bf16.mxu0 0
  %950 = vmatmul.mubr.bf16.gmra.mrb[0].mxu0 %v587
  %v951 = vpop.f32.mrb[0].mxu0
  %v952 = vadd.f32 %v167, %v951
  %v953 = vpop.f32.mrb[0].mxu0
  %v954 = vpop.f32.mrb[0].mxu0
  %v955 = vadd.f32 %v167, %v954
  %v956 = vpop.f32.mrb[0].mxu0
  %957 = vmatprep.mubr.bf16.mxu0 0
  %958 = vmatmul.mubr.bf16.gmra.mrb[0].mxu0 %v590
  %v959 = vpop.f32.mrb[0].mxu0
  %v960 = vadd.f32 %v167, %v959
  %v961 = vpop.f32.mrb[0].mxu0
  %v962 = vpop.f32.mrb[0].mxu0
  %v963 = vadd.f32 %v167, %v962
  %v964 = vpop.f32.mrb[0].mxu0
  %965 = vmatprep.mubr.bf16.mxu0 0
  %966 = vmatmul.mubr.bf16.gmra.mrb[0].mxu0 %v593
  %v967 = vpop.f32.mrb[0].mxu0
  %v968 = vadd.f32 %v167, %v967
  %v969 = vpop.f32.mrb[0].mxu0
  %v970 = vpop.f32.mrb[0].mxu0
  %v971 = vadd.f32 %v167, %v970
  %v972 = vpop.f32.mrb[0].mxu0
  %973 = vmatprep.mubr.bf16.mxu0 0
  %974 = vmatmul.mubr.bf16.gmra.mrb[0].mxu0 %v596
  %v975 = vpop.f32.mrb[0].mxu0
  %v976 = vadd.f32 %v167, %v975
  %v977 = vpop.f32.mrb[0].mxu0
  %v978 = vpop.f32.mrb[0].mxu0
  %v979 = vadd.f32 %v167, %v978
  %v980 = vpop.f32.mrb[0].mxu0
  %981 = vmatprep.mubr.bf16.mxu0 0
  %982 = vmatmul.mubr.bf16.gmra.mrb[0].mxu0 %v599
  %v983 = vpop.f32.mrb[0].mxu0
  %v984 = vadd.f32 %v167, %v983
  %v985 = vpop.f32.mrb[0].mxu0
  %v986 = vpop.f32.mrb[0].mxu0
  %v987 = vadd.f32 %v167, %v986
  %v988 = vpop.f32.mrb[0].mxu0
  %989 = vmatprep.mubr.bf16.mxu0 0
  %990 = vmatmul.mubr.bf16.gmra.mrb[0].mxu0 %v602
  %v991 = vpop.f32.mrb[0].mxu0
  %v992 = vadd.f32 %v167, %v991
  %v993 = vpop.f32.mrb[0].mxu0
  %v994 = vpop.f32.mrb[0].mxu0
  %v995 = vadd.f32 %v167, %v994
  %v996 = vpop.f32.mrb[0].mxu0
  %997 = vmatprep.mubr.bf16.mxu0 0
  %998 = vmatmul.mubr.bf16.gmra.mrb[0].mxu0 %v605
  %v999 = vpop.f32.mrb[0].mxu0
  %v1000 = vadd.f32 %v167, %v999
  %v1001 = vpop.f32.mrb[0].mxu0
  %v1002 = vpop.f32.mrb[0].mxu0
  %v1003 = vadd.f32 %v167, %v1002
  %v1004 = vpop.f32.mrb[0].mxu0
  %1005 = vmatprep.mubr.bf16.mxu0 0
  %1006 = vmatmul.mubr.bf16.gmra.mrb[0].mxu0 %v608
  %v1007 = vpop.f32.mrb[0].mxu0
  %v1008 = vadd.f32 %v167, %v1007
  %v1009 = vpop.f32.mrb[0].mxu0
  %v1010 = vpop.f32.mrb[0].mxu0
  %v1011 = vadd.f32 %v167, %v1010
  %v1012 = vpop.f32.mrb[0].mxu0
  %1013 = vmatprep.mubr.bf16.mxu0 0
  %1014 = vmatmul.mubr.bf16.gmra.mrb[0].mxu0 %v611
  %v1015 = vpop.f32.mrb[0].mxu0
  %v1016 = vadd.f32 %v167, %v1015
  %v1017 = vpop.f32.mrb[0].mxu0
  %v1018 = vpop.f32.mrb[0].mxu0
  %v1019 = vadd.f32 %v167, %v1018
  %v1020 = vpop.f32.mrb[0].mxu0
  %1021 = vmatprep.mubr.bf16.mxu0 0
  %1022 = vmatmul.mubr.bf16.gmra.mrb[0].mxu0 %v614
  %v1023 = vpop.f32.mrb[0].mxu0
  %v1024 = vadd.f32 %v167, %v1023
  %v1025 = vpop.f32.mrb[0].mxu0
  %v1026 = vpop.f32.mrb[0].mxu0
  %v1027 = vadd.f32 %v167, %v1026
  %v1028 = vpop.f32.mrb[0].mxu0
  %1029 = vmatprep.mubr.bf16.mxu0 0
  %1030 = vmatmul.mubr.bf16.gmra.mrb[0].mxu0 %v617
  %v1031 = vpop.f32.mrb[0].mxu0
  %v1032 = vadd.f32 %v167, %v1031
  %v1033 = vpop.f32.mrb[0].mxu0
  %v1034 = vpop.f32.mrb[0].mxu0
  %v1035 = vadd.f32 %v167, %v1034
  %v1036 = vpop.f32.mrb[0].mxu0
  %1037 = vmatprep.mubr.bf16.mxu0 0
  %1038 = vmatmul.mubr.bf16.gmra.mrb[0].mxu0 %v620
  %v1039 = vpop.f32.mrb[0].mxu0
  %v1040 = vadd.f32 %v167, %v1039
  %v1041 = vpop.f32.mrb[0].mxu0
  %v1042 = vpop.f32.mrb[0].mxu0
  %v1043 = vadd.f32 %v167, %v1042
  %v1044 = vpop.f32.mrb[0].mxu0
  %1045 = vmatprep.mubr.bf16.mxu0 0
  %1046 = vmatmul.mubr.bf16.gmra.mrb[0].mxu0 %v623
  %v1047 = vpop.f32.mrb[0].mxu0
  %v1048 = vadd.f32 %v167, %v1047
  %v1049 = vpop.f32.mrb[0].mxu0
  %v1050 = vpop.f32.mrb[0].mxu0
  %v1051 = vadd.f32 %v167, %v1050
  %v1052 = vpop.f32.mrb[0].mxu0
  %1053 = vmatprep.mubr.bf16.mxu0 0
  %1054 = vmatmul.mubr.bf16.gmra.mrb[0].mxu0 %v626
  %v1055 = vpop.f32.mrb[0].mxu0
  %v1056 = vadd.f32 %v167, %v1055
  %v1057 = vpop.f32.mrb[0].mxu0
  %v1058 = vpop.f32.mrb[0].mxu0
  %v1059 = vadd.f32 %v167, %v1058
  %v1060 = vpop.f32.mrb[0].mxu0
  %1061 = vmatprep.mubr.bf16.mxu0 0
  %1062 = vmatmul.mubr.bf16.gmra.mrb[0].mxu0 %v629
  %v1063 = vpop.f32.mrb[0].mxu0
  %v1064 = vadd.f32 %v167, %v1063
  %v1065 = vpop.f32.mrb[0].mxu0
  %v1066 = vpop.f32.mrb[0].mxu0
  %v1067 = vadd.f32 %v167, %v1066
  %v1068 = vpop.f32.mrb[0].mxu0
  %1069 = vmatprep.mubr.bf16.mxu0 0
  %1070 = vmatmul.mubr.bf16.gmra.mrb[0].mxu0 %v632
  %v1071 = vpop.f32.mrb[0].mxu0
  %v1072 = vadd.f32 %v167, %v1071
  %v1073 = vpop.f32.mrb[0].mxu0
  %v1074 = vpop.f32.mrb[0].mxu0
  %v1075 = vadd.f32 %v167, %v1074
  %v1076 = vpop.f32.mrb[0].mxu0
  %1077 = vmatprep.mubr.bf16.mxu0 0
  %1078 = vmatmul.mubr.bf16.gmra.mrb[0].mxu0 %v635
  %v1079 = vpop.f32.mrb[0].mxu0
  %v1080 = vadd.f32 %v167, %v1079
  %v1081 = vpop.f32.mrb[0].mxu0
  %v1082 = vpop.f32.mrb[0].mxu0
  %v1083 = vadd.f32 %v167, %v1082
  %v1084 = vpop.f32.mrb[0].mxu0
  %1085 = vmatprep.mubr.bf16.mxu0 0
  %1086 = vmatmul.mubr.bf16.gmra.mrb[0].mxu0 %v638
  %v1087 = vpop.f32.mrb[0].mxu0
  %v1088 = vadd.f32 %v167, %v1087
  %v1089 = vpop.f32.mrb[0].mxu0
  %v1090 = vpop.f32.mrb[0].mxu0
  %v1091 = vadd.f32 %v167, %v1090
  %v1092 = vpop.f32.mrb[0].mxu0
  %1093 = vmatprep.mubr.bf16.mxu0 0
  %1094 = vmatmul.mubr.bf16.gmra.mrb[0].mxu0 %v641
  %v1095 = vpop.f32.mrb[0].mxu0
  %v1096 = vadd.f32 %v167, %v1095
  %v1097 = vpop.f32.mrb[0].mxu0
  %v1098 = vpop.f32.mrb[0].mxu0
  %v1099 = vadd.f32 %v167, %v1098
  %v1100 = vpop.f32.mrb[0].mxu0
  %1101 = vmatprep.mubr.bf16.mxu0 0
  %1102 = vmatmul.mubr.bf16.gmra.mrb[0].mxu0 %v644
  %v1103 = vpop.f32.mrb[0].mxu0
  %v1104 = vadd.f32 %v167, %v1103
  %v1105 = vpop.f32.mrb[0].mxu0
  %v1106 = vpop.f32.mrb[0].mxu0
  %v1107 = vadd.f32 %v167, %v1106
  %v1108 = vpop.f32.mrb[0].mxu0
  %1109 = vmatprep.mubr.bf16.mxu0 0
  %1110 = vmatmul.mubr.bf16.gmra.mrb[0].mxu0 %v647
  %v1111 = vpop.f32.mrb[0].mxu0
  %v1112 = vadd.f32 %v167, %v1111
  %v1113 = vpop.f32.mrb[0].mxu0
  %v1114 = vpop.f32.mrb[0].mxu0
  %v1115 = vadd.f32 %v167, %v1114
  %v1116 = vpop.f32.mrb[0].mxu0
  %1117 = vmatprep.mubr.bf16.mxu0 0
  %1118 = vmatmul.mubr.bf16.gmra.mrb[0].mxu0 %v650
  %v1119 = vpop.f32.mrb[0].mxu0
  %v1120 = vadd.f32 %v167, %v1119
  %v1121 = vpop.f32.mrb[0].mxu0
  %v1122 = vpop.f32.mrb[0].mxu0
  %v1123 = vadd.f32 %v167, %v1122
  %v1124 = vpop.f32.mrb[0].mxu0
  %1125 = vmatprep.mubr.bf16.mxu0 0
  %1126 = vmatmul.mubr.bf16.gmra.mrb[0].mxu0 %v653
  %v1127 = vpop.f32.mrb[0].mxu0
  %v1128 = vadd.f32 %v167, %v1127
  %v1129 = vpop.f32.mrb[0].mxu0
  %v1130 = vpop.f32.mrb[0].mxu0
  %v1131 = vadd.f32 %v167, %v1130
  %v1132 = vpop.f32.mrb[0].mxu0
  %1133 = vmatprep.mubr.bf16.mxu0 0
  %1134 = vmatmul.mubr.bf16.gmra.mrb[0].mxu0 %v656
  %v1135 = vpop.f32.mrb[0].mxu0
  %v1136 = vadd.f32 %v167, %v1135
  %v1137 = vpop.f32.mrb[0].mxu0
  %v1138 = vpop.f32.mrb[0].mxu0
  %v1139 = vadd.f32 %v167, %v1138
  %v1140 = vpop.f32.mrb[0].mxu0
  %1141 = vmatprep.mubr.bf16.mxu0 0
  %1142 = vmatmul.mubr.bf16.gmra.mrb[0].mxu0 %v659
  %v1143 = vpop.f32.mrb[0].mxu0
  %v1144 = vadd.f32 %v167, %v1143
  %v1145 = vpop.f32.mrb[0].mxu0
  %v1146 = vpop.f32.mrb[0].mxu0
  %v1147 = vadd.f32 %v167, %v1146
  %v1148 = vpop.f32.mrb[0].mxu0
  %1149 = vmatprep.mubr.bf16.mxu0 0
  %1150 = vmatmul.mubr.bf16.gmra.mrb[0].mxu0 %v662
  %v1151 = vpop.f32.mrb[0].mxu0
  %v1152 = vadd.f32 %v167, %v1151
  %v1153 = vpop.f32.mrb[0].mxu0
  %v1154 = vpop.f32.mrb[0].mxu0
  %v1155 = vadd.f32 %v167, %v1154
  %v1156 = vpop.f32.mrb[0].mxu0
  %1157 = vmatprep.mubr.bf16.mxu0 0
  %1158 = vmatmul.mubr.bf16.gmra.mrb[0].mxu0 %v665
  %v1159 = vpop.f32.mrb[0].mxu0
  %v1160 = vadd.f32 %v167, %v1159
  %v1161 = vpop.f32.mrb[0].mxu0
  %v1162 = vpop.f32.mrb[0].mxu0
  %v1163 = vadd.f32 %v167, %v1162
  %v1164 = vpop.f32.mrb[0].mxu0
  %1165 = vmatprep.mubr.bf16.mxu0 0
  %1166 = vmatmul.mubr.bf16.gmra.mrb[0].mxu0 %v668
  %v1167 = vpop.f32.mrb[0].mxu0
  %v1168 = vadd.f32 %v167, %v1167
  %v1169 = vpop.f32.mrb[0].mxu0
  %v1170 = vpop.f32.mrb[0].mxu0
  %v1171 = vadd.f32 %v167, %v1170
  %v1172 = vpop.f32.mrb[0].mxu0
  %1173 = vmatprep.mubr.bf16.mxu0 0
  %1174 = vmatmul.mubr.bf16.gmra.mrb[0].mxu0 %v671
  %v1175 = vpop.f32.mrb[0].mxu0
  %v1176 = vadd.f32 %v167, %v1175
  %v1177 = vpop.f32.mrb[0].mxu0
  %v1178 = vpop.f32.mrb[0].mxu0
  %v1179 = vadd.f32 %v167, %v1178
  %v1180 = vpop.f32.mrb[0].mxu0
  %1181 = vmatprep.mubr.bf16.mxu0 0
  %1182 = vmatmul.mubr.bf16.gmra.mrb[0].mxu0 %v674
  %v1183 = vpop.f32.mrb[0].mxu0
  %v1184 = vadd.f32 %v167, %v1183
  %v1185 = vpop.f32.mrb[0].mxu0
  %v1186 = vpop.f32.mrb[0].mxu0
  %v1187 = vadd.f32 %v167, %v1186
  %v1188 = vpop.f32.mrb[0].mxu0
  %1189 = vmatprep.mubr.bf16.mxu0 0
  %1190 = vmatmul.mubr.bf16.gmra.mrb[0].mxu0 %v677
  %v1191 = vpop.f32.mrb[0].mxu0
  %v1192 = vadd.f32 %v167, %v1191
  %v1193 = vpop.f32.mrb[0].mxu0
  %v1194 = vpop.f32.mrb[0].mxu0
  %v1195 = vadd.f32 %v167, %v1194
  %v1196 = vpop.f32.mrb[0].mxu0
  %1197 = vmatprep.mubr.bf16.mxu0 0
  %1198 = vmatmul.mubr.bf16.gmra.mrb[0].mxu0 %v680
  %v1199 = vpop.f32.mrb[0].mxu0
  %v1200 = vadd.f32 %v167, %v1199
  %v1201 = vpop.f32.mrb[0].mxu0
  %v1202 = vpop.f32.mrb[0].mxu0
  %v1203 = vadd.f32 %v167, %v1202
  %v1204 = vpop.f32.mrb[0].mxu0
  %1205 = vmatprep.mubr.bf16.mxu0 0
  %1206 = vmatmul.mubr.bf16.gmra.mrb[0].mxu0 %v683
  %v1207 = vpop.f32.mrb[0].mxu0
  %v1208 = vadd.f32 %v167, %v1207
  %v1209 = vpop.f32.mrb[0].mxu0
  %v1210 = vpop.f32.mrb[0].mxu0
  %v1211 = vadd.f32 %v167, %v1210
  %v1212 = vpop.f32.mrb[0].mxu0
  %1213 = vmatprep.mubr.bf16.mxu0 0
  %1214 = vmatmul.mubr.bf16.gmra.mrb[0].mxu0 %v686
  %v1215 = vpop.f32.mrb[0].mxu0
  %v1216 = vadd.f32 %v167, %v1215
  %v1217 = vpop.f32.mrb[0].mxu0
  %v1218 = vpop.f32.mrb[0].mxu0
  %v1219 = vadd.f32 %v167, %v1218
  %v1220 = vpop.f32.mrb[0].mxu0
  %1221 = vmatprep.mubr.bf16.mxu0 0
  %1222 = vmatmul.mubr.bf16.gmra.mrb[0].mxu0 %v689
  %v1223 = vpop.f32.mrb[0].mxu0
  %v1224 = vadd.f32 %v167, %v1223
  %v1225 = vpop.f32.mrb[0].mxu0
  %v1226 = vpop.f32.mrb[0].mxu0
  %v1227 = vadd.f32 %v167, %v1226
  %v1228 = vpop.f32.mrb[0].mxu0
  %1229 = vmatprep.mubr.bf16.mxu0 0
  %1230 = vmatmul.mubr.bf16.gmra.mrb[0].mxu0 %v692
  %v1231 = vpop.f32.mrb[0].mxu0
  %v1232 = vadd.f32 %v167, %v1231
  %v1233 = vpop.f32.mrb[0].mxu0
  %v1234 = vpop.f32.mrb[0].mxu0
  %v1235 = vadd.f32 %v167, %v1234
  %v1236 = vpop.f32.mrb[0].mxu0
  %1237 = vmatprep.mubr.bf16.mxu0 0
  %1238 = vmatmul.mubr.bf16.gmra.mrb[0].mxu0 %v695
  %v1239 = vpop.f32.mrb[0].mxu0
  %v1240 = vadd.f32 %v167, %v1239
  %v1241 = vpop.f32.mrb[0].mxu0
  %v1242 = vpop.f32.mrb[0].mxu0
  %v1243 = vadd.f32 %v167, %v1242
  %v1244 = vpop.f32.mrb[0].mxu0
  %1245 = vdwg.mxu0
  %v1246 = vmax.f32 %v736, 0.0
  %v1247 = vmax.f32 %v739, 0.0
  %v1248 = vmax.f32 %v744, 0.0
  %v1249 = vmax.f32 %v747, 0.0
  %v1250 = vmax.f32 %v752, 0.0
  %v1251 = vmax.f32 %v755, 0.0
  %v1252 = vmax.f32 %v760, 0.0
  %v1253 = vmax.f32 %v763, 0.0
  %v1254 = vmax.f32 %v768, 0.0
  %v1255 = vmax.f32 %v771, 0.0
  %v1256 = vmax.f32 %v776, 0.0
  %v1257 = vmax.f32 %v779, 0.0
  %v1258 = vmax.f32 %v784, 0.0
  %v1259 = vmax.f32 %v787, 0.0
  %v1260 = vmax.f32 %v792, 0.0
  %v1261 = vmax.f32 %v795, 0.0
  %v1262 = vmax.f32 %v800, 0.0
  %v1263 = vmax.f32 %v803, 0.0
  %v1264 = vmax.f32 %v808, 0.0
  %v1265 = vmax.f32 %v811, 0.0
  %v1266 = vmax.f32 %v816, 0.0
  %v1267 = vmax.f32 %v819, 0.0
  %v1268 = vmax.f32 %v824, 0.0
  %v1269 = vmax.f32 %v827, 0.0
  %v1270 = vmax.f32 %v832, 0.0
  %v1271 = vmax.f32 %v835, 0.0
  %v1272 = vmax.f32 %v840, 0.0
  %v1273 = vmax.f32 %v843, 0.0
  %v1274 = vmax.f32 %v848, 0.0
  %v1275 = vmax.f32 %v851, 0.0
  %v1276 = vmax.f32 %v856, 0.0
  %v1277 = vmax.f32 %v859, 0.0
  %v1278 = vmax.f32 %v864, 0.0
  %v1279 = vmax.f32 %v867, 0.0
  %v1280 = vmax.f32 %v872, 0.0
  %v1281 = vmax.f32 %v875, 0.0
  %v1282 = vmax.f32 %v880, 0.0
  %v1283 = vmax.f32 %v883, 0.0
  %v1284 = vmax.f32 %v888, 0.0
  %v1285 = vmax.f32 %v891, 0.0
  %v1286 = vmax.f32 %v896, 0.0
  %v1287 = vmax.f32 %v899, 0.0
  %v1288 = vmax.f32 %v904, 0.0
  %v1289 = vmax.f32 %v907, 0.0
  %v1290 = vmax.f32 %v912, 0.0
  %v1291 = vmax.f32 %v915, 0.0
  %v1292 = vmax.f32 %v920, 0.0
  %v1293 = vmax.f32 %v923, 0.0
  %v1294 = vmax.f32 %v928, 0.0
  %v1295 = vmax.f32 %v931, 0.0
  %v1296 = vmax.f32 %v936, 0.0
  %v1297 = vmax.f32 %v939, 0.0
  %v1298 = vmax.f32 %v944, 0.0
  %v1299 = vmax.f32 %v947, 0.0
  %v1300 = vmax.f32 %v952, 0.0
  %v1301 = vmax.f32 %v955, 0.0
  %v1302 = vmax.f32 %v960, 0.0
  %v1303 = vmax.f32 %v963, 0.0
  %v1304 = vmax.f32 %v968, 0.0
  %v1305 = vmax.f32 %v971, 0.0
  %v1306 = vmax.f32 %v976, 0.0
  %v1307 = vmax.f32 %v979, 0.0
  %v1308 = vmax.f32 %v984, 0.0
  %v1309 = vmax.f32 %v987, 0.0
  %v1310 = vmax.f32 %v992, 0.0
  %v1311 = vmax.f32 %v995, 0.0
  %v1312 = vmax.f32 %v1000, 0.0
  %v1313 = vmax.f32 %v1003, 0.0
  %v1314 = vmax.f32 %v1008, 0.0
  %v1315 = vmax.f32 %v1011, 0.0
  %v1316 = vmax.f32 %v1016, 0.0
  %v1317 = vmax.f32 %v1019, 0.0
  %v1318 = vmax.f32 %v1024, 0.0
  %v1319 = vmax.f32 %v1027, 0.0
  %v1320 = vmax.f32 %v1032, 0.0
  %v1321 = vmax.f32 %v1035, 0.0
  %v1322 = vmax.f32 %v1040, 0.0
  %v1323 = vmax.f32 %v1043, 0.0
  %v1324 = vmax.f32 %v1048, 0.0
  %v1325 = vmax.f32 %v1051, 0.0
  %v1326 = vmax.f32 %v1056, 0.0
  %v1327 = vmax.f32 %v1059, 0.0
  %v1328 = vmax.f32 %v1064, 0.0
  %v1329 = vmax.f32 %v1067, 0.0
  %v1330 = vmax.f32 %v1072, 0.0
  %v1331 = vmax.f32 %v1075, 0.0
  %v1332 = vmax.f32 %v1080, 0.0
  %v1333 = vmax.f32 %v1083, 0.0
  %v1334 = vmax.f32 %v1088, 0.0
  %v1335 = vmax.f32 %v1091, 0.0
  %v1336 = vmax.f32 %v1096, 0.0
  %v1337 = vmax.f32 %v1099, 0.0
  %v1338 = vmax.f32 %v1104, 0.0
  %v1339 = vmax.f32 %v1107, 0.0
  %v1340 = vmax.f32 %v1112, 0.0
  %v1341 = vmax.f32 %v1115, 0.0
  %v1342 = vmax.f32 %v1120, 0.0
  %v1343 = vmax.f32 %v1123, 0.0
  %v1344 = vmax.f32 %v1128, 0.0
  %v1345 = vmax.f32 %v1131, 0.0
  %v1346 = vmax.f32 %v1136, 0.0
  %v1347 = vmax.f32 %v1139, 0.0
  %v1348 = vmax.f32 %v1144, 0.0
  %v1349 = vmax.f32 %v1147, 0.0
  %v1350 = vmax.f32 %v1152, 0.0
  %v1351 = vmax.f32 %v1155, 0.0
  %v1352 = vmax.f32 %v1160, 0.0
  %v1353 = vmax.f32 %v1163, 0.0
  %v1354 = vmax.f32 %v1168, 0.0
  %v1355 = vmax.f32 %v1171, 0.0
  %v1356 = vmax.f32 %v1176, 0.0
  %v1357 = vmax.f32 %v1179, 0.0
  %v1358 = vmax.f32 %v1184, 0.0
  %v1359 = vmax.f32 %v1187, 0.0
  %v1360 = vmax.f32 %v1192, 0.0
  %v1361 = vmax.f32 %v1195, 0.0
  %v1362 = vmax.f32 %v1200, 0.0
  %v1363 = vmax.f32 %v1203, 0.0
  %v1364 = vmax.f32 %v1208, 0.0
  %v1365 = vmax.f32 %v1211, 0.0
  %v1366 = vmax.f32 %v1216, 0.0
  %v1367 = vmax.f32 %v1219, 0.0
  %v1368 = vmax.f32 %v1224, 0.0
  %v1369 = vmax.f32 %v1227, 0.0
  %v1370 = vmax.f32 %v1232, 0.0
  %v1371 = vmax.f32 %v1235, 0.0
  %v1372 = vmax.f32 %v1240, 0.0
  %v1373 = vmax.f32 %v1243, 0.0
  %v1374 = vadd.f32 %v1246, %v1247
  %v1375 = vadd.f32 %v1374, %v1248
  %v1376 = vadd.f32 %v1375, %v1249
  %v1377 = vadd.f32 %v1376, %v1250
  %v1378 = vadd.f32 %v1377, %v1251
  %v1379 = vadd.f32 %v1378, %v1252
  %v1380 = vadd.f32 %v1379, %v1253
  %v1381 = vadd.f32 %v1380, %v1254
  %v1382 = vadd.f32 %v1381, %v1255
  %v1383 = vadd.f32 %v1382, %v1256
  %v1384 = vadd.f32 %v1383, %v1257
  %v1385 = vadd.f32 %v1384, %v1258
  %v1386 = vadd.f32 %v1385, %v1259
  %v1387 = vadd.f32 %v1386, %v1260
  %v1388 = vadd.f32 %v1387, %v1261
  %v1389 = vadd.f32 %v1388, %v1262
  %v1390 = vadd.f32 %v1389, %v1263
  %v1391 = vadd.f32 %v1390, %v1264
  %v1392 = vadd.f32 %v1391, %v1265
  %v1393 = vadd.f32 %v1392, %v1266
  %v1394 = vadd.f32 %v1393, %v1267
  %v1395 = vadd.f32 %v1394, %v1268
  %v1396 = vadd.f32 %v1395, %v1269
  %v1397 = vadd.f32 %v1396, %v1270
  %v1398 = vadd.f32 %v1397, %v1271
  %v1399 = vadd.f32 %v1398, %v1272
  %v1400 = vadd.f32 %v1399, %v1273
  %v1401 = vadd.f32 %v1400, %v1274
  %v1402 = vadd.f32 %v1401, %v1275
  %v1403 = vadd.f32 %v1402, %v1276
  %v1404 = vadd.f32 %v1403, %v1277
  %v1405 = vrot.slane %v1404, 4
  %v1406 = vadd.f32 %v1404, %v1405
  %v1407 = vrot.slane %v1406, 2
  %v1408 = vadd.f32 %v1406, %v1407
  %v1409 = vrot.slane %v1408, 1
  %v1410 = vadd.f32 %v1408, %v1409
  %v1411 = vadd.f32 %v1278, %v1279
  %v1412 = vadd.f32 %v1411, %v1280
  %v1413 = vadd.f32 %v1412, %v1281
  %v1414 = vadd.f32 %v1413, %v1282
  %v1415 = vadd.f32 %v1414, %v1283
  %v1416 = vadd.f32 %v1415, %v1284
  %v1417 = vadd.f32 %v1416, %v1285
  %v1418 = vadd.f32 %v1417, %v1286
  %v1419 = vadd.f32 %v1418, %v1287
  %v1420 = vadd.f32 %v1419, %v1288
  %v1421 = vadd.f32 %v1420, %v1289
  %v1422 = vadd.f32 %v1421, %v1290
  %v1423 = vadd.f32 %v1422, %v1291
  %v1424 = vadd.f32 %v1423, %v1292
  %v1425 = vadd.f32 %v1424, %v1293
  %v1426 = vadd.f32 %v1425, %v1294
  %v1427 = vadd.f32 %v1426, %v1295
  %v1428 = vadd.f32 %v1427, %v1296
  %v1429 = vadd.f32 %v1428, %v1297
  %v1430 = vadd.f32 %v1429, %v1298
  %v1431 = vadd.f32 %v1430, %v1299
  %v1432 = vadd.f32 %v1431, %v1300
  %v1433 = vadd.f32 %v1432, %v1301
  %v1434 = vadd.f32 %v1433, %v1302
  %v1435 = vadd.f32 %v1434, %v1303
  %v1436 = vadd.f32 %v1435, %v1304
  %v1437 = vadd.f32 %v1436, %v1305
  %v1438 = vadd.f32 %v1437, %v1306
  %v1439 = vadd.f32 %v1438, %v1307
  %v1440 = vadd.f32 %v1439, %v1308
  %v1441 = vadd.f32 %v1440, %v1309
  %v1442 = vrot.slane %v1441, 4
  %v1443 = vadd.f32 %v1441, %v1442
  %v1444 = vrot.slane %v1443, 2
  %v1445 = vadd.f32 %v1443, %v1444
  %v1446 = vrot.slane %v1445, 1
  %v1447 = vadd.f32 %v1445, %v1446
  %v1448 = vadd.f32 %v1310, %v1311
  %v1449 = vadd.f32 %v1448, %v1312
  %v1450 = vadd.f32 %v1449, %v1313
  %v1451 = vadd.f32 %v1450, %v1314
  %v1452 = vadd.f32 %v1451, %v1315
  %v1453 = vadd.f32 %v1452, %v1316
  %v1454 = vadd.f32 %v1453, %v1317
  %v1455 = vadd.f32 %v1454, %v1318
  %v1456 = vadd.f32 %v1455, %v1319
  %v1457 = vadd.f32 %v1456, %v1320
  %v1458 = vadd.f32 %v1457, %v1321
  %v1459 = vadd.f32 %v1458, %v1322
  %v1460 = vadd.f32 %v1459, %v1323
  %v1461 = vadd.f32 %v1460, %v1324
  %v1462 = vadd.f32 %v1461, %v1325
  %v1463 = vadd.f32 %v1462, %v1326
  %v1464 = vadd.f32 %v1463, %v1327
  %v1465 = vadd.f32 %v1464, %v1328
  %v1466 = vadd.f32 %v1465, %v1329
  %v1467 = vadd.f32 %v1466, %v1330
  %v1468 = vadd.f32 %v1467, %v1331
  %v1469 = vadd.f32 %v1468, %v1332
  %v1470 = vadd.f32 %v1469, %v1333
  %v1471 = vadd.f32 %v1470, %v1334
  %v1472 = vadd.f32 %v1471, %v1335
  %v1473 = vadd.f32 %v1472, %v1336
  %v1474 = vadd.f32 %v1473, %v1337
  %v1475 = vadd.f32 %v1474, %v1338
  %v1476 = vadd.f32 %v1475, %v1339
  %v1477 = vadd.f32 %v1476, %v1340
  %v1478 = vadd.f32 %v1477, %v1341
  %v1479 = vrot.slane %v1478, 4
  %v1480 = vadd.f32 %v1478, %v1479
  %v1481 = vrot.slane %v1480, 2
  %v1482 = vadd.f32 %v1480, %v1481
  %v1483 = vrot.slane %v1482, 1
  %v1484 = vadd.f32 %v1482, %v1483
  %v1485 = vadd.f32 %v1342, %v1343
  %v1486 = vadd.f32 %v1485, %v1344
  %v1487 = vadd.f32 %v1486, %v1345
  %v1488 = vadd.f32 %v1487, %v1346
  %v1489 = vadd.f32 %v1488, %v1347
  %v1490 = vadd.f32 %v1489, %v1348
  %v1491 = vadd.f32 %v1490, %v1349
  %v1492 = vadd.f32 %v1491, %v1350
  %v1493 = vadd.f32 %v1492, %v1351
  %v1494 = vadd.f32 %v1493, %v1352
  %v1495 = vadd.f32 %v1494, %v1353
  %v1496 = vadd.f32 %v1495, %v1354
  %v1497 = vadd.f32 %v1496, %v1355
  %v1498 = vadd.f32 %v1497, %v1356
  %v1499 = vadd.f32 %v1498, %v1357
  %v1500 = vadd.f32 %v1499, %v1358
  %v1501 = vadd.f32 %v1500, %v1359
  %v1502 = vadd.f32 %v1501, %v1360
  %v1503 = vadd.f32 %v1502, %v1361
  %v1504 = vadd.f32 %v1503, %v1362
  %v1505 = vadd.f32 %v1504, %v1363
  %v1506 = vadd.f32 %v1505, %v1364
  %v1507 = vadd.f32 %v1506, %v1365
  %v1508 = vadd.f32 %v1507, %v1366
  %v1509 = vadd.f32 %v1508, %v1367
  %v1510 = vadd.f32 %v1509, %v1368
  %v1511 = vadd.f32 %v1510, %v1369
  %v1512 = vadd.f32 %v1511, %v1370
  %v1513 = vadd.f32 %v1512, %v1371
  %v1514 = vadd.f32 %v1513, %v1372
  %v1515 = vadd.f32 %v1514, %v1373
  %v1516 = vrot.slane %v1515, 4
  %v1517 = vadd.f32 %v1515, %v1516
  %v1518 = vrot.slane %v1517, 2
  %v1519 = vadd.f32 %v1517, %v1518
  %v1520 = vrot.slane %v1519, 1
  %v1521 = vadd.f32 %v1519, %v1520
  %v1522 = vmul.f32 %v1410, 0.00390625
  %v1523 = vmul.f32 %v1447, 0.00390625
  %v1524 = vmul.f32 %v1484, 0.00390625
  %v1525 = vmul.f32 %v1521, 0.00390625
  %v1526 = vpack.c.bf16 %v1522, %v1522
  %v1527 = vpack.c.bf16 %v1523, %v1523
  %v1528 = vpack.c.bf16 %v1524, %v1524
  %v1529 = vpack.c.bf16 %v1525, %v1525
  %v1530 = vld [vmem:[%s3] sm:$0xff]
  %v1531 = vld [vmem:[%s3 + $0x8] sm:$0xff]
  %v1532 = vld [vmem:[%s3 + $0x10] sm:$0xff]
  %v1533 = vld [vmem:[%s3 + $0x18] sm:$0xff]
  %v1534 = vld [vmem:[%s3 + $0x20] sm:$0xff]
  %v1535 = vld [vmem:[%s3 + $0x28] sm:$0xff]
  %v1536 = vld [vmem:[%s3 + $0x30] sm:$0xff]
  %v1537 = vld [vmem:[%s3 + $0x38] sm:$0xff]
  %v1538 = vld [vmem:[%s3 + $0x40] sm:$0xff]
  %v1539 = vld [vmem:[%s3 + $0x48] sm:$0xff]
  %v1540 = vld [vmem:[%s3 + $0x50] sm:$0xff]
  %v1541 = vld [vmem:[%s3 + $0x58] sm:$0xff]
  %v1542 = vld [vmem:[%s3 + $0x60] sm:$0xff]
  %v1543 = vld [vmem:[%s3 + $0x68] sm:$0xff]
  %v1544 = vld [vmem:[%s3 + $0x70] sm:$0xff]
  %v1545 = vld [vmem:[%s3 + $0x78] sm:$0xff]
  %v1546 = vld [vmem:[%s4] sm:$0x3]
  %v1548 = vlaneseq
  %v1549 = vshrl.u32 %v1548, 7
  %v1550 = vsub.s32 0, %v1549
  %v1551 = vrot.slane %v1546, %v1550
  %v1552 = vlaneseq
  %v1553 = vshrl.u32 %v1552, 7
  %v1554 = vsub.s32 1, %v1553
  %v1555 = vrot.slane %v1546, %v1554
  %v1562 = vunpack.c.l.b16 %v1526
  %v1563 = vunpack.c.l.b16 %v1527
  %v1564 = vunpack.c.l.b16 %v1528
  %v1565 = vunpack.c.l.b16 %v1529
  %vm1566 = vcmask 1041409
  %v1567 = vsel %vm1566, %v1563, %v1562
  %vm1568 = vcmask 1042434
  %v1569 = vsel %vm1568, %v1564, %v1567
  %vm1570 = vcmask 1043459
  %v1571 = vsel %vm1570, %v1565, %v1569
  %v1572 = vpack.c.b16 %v1571, %v1571
  %v1590 = vunpack.c.l.b16 %v1530
  %v1591 = vunpack.c.h.b16 %v1530
  %v1592 = vunpack.c.l.b16 %v1531
  %v1593 = vunpack.c.h.b16 %v1531
  %v1594 = vunpack.c.l.b16 %v1532
  %v1595 = vunpack.c.h.b16 %v1532
  %v1596 = vunpack.c.l.b16 %v1533
  %v1597 = vunpack.c.h.b16 %v1533
  %v1598 = vunpack.c.l.b16 %v1534
  %v1599 = vunpack.c.h.b16 %v1534
  %v1600 = vunpack.c.l.b16 %v1535
  %v1601 = vunpack.c.h.b16 %v1535
  %v1602 = vunpack.c.l.b16 %v1536
  %v1603 = vunpack.c.h.b16 %v1536
  %v1604 = vunpack.c.l.b16 %v1537
  %v1605 = vunpack.c.h.b16 %v1537
  %v1606 = vunpack.c.l.b16 %v1538
  %v1607 = vunpack.c.h.b16 %v1538
  %v1608 = vunpack.c.l.b16 %v1539
  %v1609 = vunpack.c.h.b16 %v1539
  %v1610 = vunpack.c.l.b16 %v1540
  %v1611 = vunpack.c.h.b16 %v1540
  %v1612 = vunpack.c.l.b16 %v1541
  %v1613 = vunpack.c.h.b16 %v1541
  %v1614 = vunpack.c.l.b16 %v1542
  %v1615 = vunpack.c.h.b16 %v1542
  %v1616 = vunpack.c.l.b16 %v1543
  %v1617 = vunpack.c.h.b16 %v1543
  %v1618 = vunpack.c.l.b16 %v1544
  %v1619 = vunpack.c.h.b16 %v1544
  %v1620 = vunpack.c.l.b16 %v1545
  %v1621 = vunpack.c.h.b16 %v1545
  %v1622 = vpack.c.b16 %v1592, %v1590
  %v1623 = vpack.c.b16 %v1593, %v1591
  %v1624 = vpack.c.b16 %v1596, %v1594
  %v1625 = vpack.c.b16 %v1597, %v1595
  %v1626 = vpack.c.b16 %v1600, %v1598
  %v1627 = vpack.c.b16 %v1601, %v1599
  %v1628 = vpack.c.b16 %v1604, %v1602
  %v1629 = vpack.c.b16 %v1605, %v1603
  %v1630 = vpack.c.b16 %v1608, %v1606
  %v1631 = vpack.c.b16 %v1609, %v1607
  %v1632 = vpack.c.b16 %v1612, %v1610
  %v1633 = vpack.c.b16 %v1613, %v1611
  %v1634 = vpack.c.b16 %v1616, %v1614
  %v1635 = vpack.c.b16 %v1617, %v1615
  %v1636 = vpack.c.b16 %v1620, %v1618
  %v1637 = vpack.c.b16 %v1621, %v1619
  %1654 = vmatprep.subr.bf16.mxu0 %v1623
  %1655 = vmatpush1.bf16.msra.mxu0 %v1622
  %1656 = vmatprep.subr.bf16.mxu0 %v1625
  %1657 = vmatpush1.bf16.msra.mxu0 %v1624
  %1658 = vmatprep.subr.bf16.mxu0 %v1627
  %1659 = vmatpush1.bf16.msra.mxu0 %v1626
  %1660 = vmatprep.subr.bf16.mxu0 %v1629
  %1661 = vmatpush1.bf16.msra.mxu0 %v1628
  %1662 = vmatprep.subr.bf16.mxu0 %v1631
  %1663 = vmatpush1.bf16.msra.mxu0 %v1630
  %1664 = vmatprep.subr.bf16.mxu0 %v1633
  %1665 = vmatpush1.bf16.msra.mxu0 %v1632
  %1666 = vmatprep.subr.bf16.mxu0 %v1635
  %1667 = vmatpush1.bf16.msra.mxu0 %v1634
  %1668 = vmatprep.subr.bf16.mxu0 %v1637
  %1669 = vmatpush1.bf16.msra.mxu0 %v1636
  %1670 = vmatprep.subr.bf16.mxu0 0
  %1671 = vmatpush1.bf16.msra.mxu0 0
  %1672 = vmatprep.subr.bf16.mxu0 0
  %1673 = vmatpush1.bf16.msra.mxu0 0
  %1674 = vmatprep.subr.bf16.mxu0 0
  %1675 = vmatpush1.bf16.msra.mxu0 0
  %1676 = vmatprep.subr.bf16.mxu0 0
  %1677 = vmatpush1.bf16.msra.mxu0 0
  %1678 = vmatprep.subr.bf16.mxu0 0
  %1679 = vmatpush1.bf16.msra.mxu0 0
  %1680 = vmatprep.subr.bf16.mxu0 0
  %1681 = vmatpush1.bf16.msra.mxu0 0
  %1682 = vmatprep.subr.bf16.mxu0 0
  %1683 = vmatpush1.bf16.msra.mxu0 0
  %1684 = vmatprep.subr.bf16.mxu0 0
  %1685 = vmatpush1.bf16.msra.mxu0 0
  %1686 = vmatprep.mubr.bf16.mxu0 0
  %1687 = vmatmul.mubr.bf16.gmra.mrb[0].mxu0 %v1572
  %v1688 = vpop.f32.mrb[0].mxu0
  %v1689 = vadd.f32 %v1551, %v1688
  %v1690 = vpop.f32.mrb[0].mxu0
  %v1691 = vadd.f32 %v1555, %v1690
  %v1692 = vpop.f32.mrb[0].mxu0
  %v1693 = vpop.f32.mrb[0].mxu0
  %1694 = vdwg.mxu0
  %1695 = vst [vmem:[%s7] sm:$0xf] %v1689
  %v1696 = vmax.f32 %v1691, 0.0
  %v1697 = vpack.c.bf16 %v1696, %v1696
  %v1698 = vld [vmem:[%s5] sm:$0xf]
  %v1699 = vld [vmem:[%s5 + $0x4] sm:$0xf]
  %v1700 = vld [vmem:[%s5 + $0x8] sm:$0xf]
  %v1701 = vld [vmem:[%s5 + $0xc] sm:$0xf]
  %v1702 = vld [vmem:[%s5 + $0x10] sm:$0xf]
  %v1703 = vld [vmem:[%s5 + $0x14] sm:$0xf]
  %v1704 = vld [vmem:[%s5 + $0x18] sm:$0xf]
  %v1705 = vld [vmem:[%s5 + $0x1c] sm:$0xf]
  %v1706 = vld [vmem:[%s5 + $0x20] sm:$0xf]
  %v1707 = vld [vmem:[%s5 + $0x24] sm:$0xf]
  %v1708 = vld [vmem:[%s5 + $0x28] sm:$0xf]
  %v1709 = vld [vmem:[%s5 + $0x2c] sm:$0xf]
  %v1710 = vld [vmem:[%s5 + $0x30] sm:$0xf]
  %v1711 = vld [vmem:[%s5 + $0x34] sm:$0xf]
  %v1712 = vld [vmem:[%s5 + $0x38] sm:$0xf]
  %v1713 = vld [vmem:[%s5 + $0x3c] sm:$0xf]
  %v1714 = vld [vmem:[%s6] sm:$0x1]
  %v1716 = vlaneseq
  %v1717 = vshrl.u32 %v1716, 7
  %v1718 = vsub.s32 0, %v1717
  %v1719 = vrot.slane %v1714, %v1718
  %v1737 = vunpack.c.l.b16 %v1698
  %v1738 = vunpack.c.l.b16 %v1699
  %v1739 = vunpack.c.l.b16 %v1700
  %v1740 = vunpack.c.l.b16 %v1701
  %v1741 = vunpack.c.l.b16 %v1702
  %v1742 = vunpack.c.l.b16 %v1703
  %v1743 = vunpack.c.l.b16 %v1704
  %v1744 = vunpack.c.l.b16 %v1705
  %v1745 = vunpack.c.l.b16 %v1706
  %v1746 = vunpack.c.l.b16 %v1707
  %v1747 = vunpack.c.l.b16 %v1708
  %v1748 = vunpack.c.l.b16 %v1709
  %v1749 = vunpack.c.l.b16 %v1710
  %v1750 = vunpack.c.l.b16 %v1711
  %v1751 = vunpack.c.l.b16 %v1712
  %v1752 = vunpack.c.l.b16 %v1713
  %v1753 = vpack.c.b16 %v1738, %v1737
  %v1754 = vpack.c.b16 %v1740, %v1739
  %v1755 = vpack.c.b16 %v1742, %v1741
  %v1756 = vpack.c.b16 %v1744, %v1743
  %v1757 = vpack.c.b16 %v1746, %v1745
  %v1758 = vpack.c.b16 %v1748, %v1747
  %v1759 = vpack.c.b16 %v1750, %v1749
  %v1760 = vpack.c.b16 %v1752, %v1751
  %1769 = vmatprep.subr.bf16.mxu0 0
  %1770 = vmatpush1.bf16.msra.mxu0 %v1753
  %1771 = vmatprep.subr.bf16.mxu0 0
  %1772 = vmatpush1.bf16.msra.mxu0 %v1754
  %1773 = vmatprep.subr.bf16.mxu0 0
  %1774 = vmatpush1.bf16.msra.mxu0 %v1755
  %1775 = vmatprep.subr.bf16.mxu0 0
  %1776 = vmatpush1.bf16.msra.mxu0 %v1756
  %1777 = vmatprep.subr.bf16.mxu0 0
  %1778 = vmatpush1.bf16.msra.mxu0 %v1757
  %1779 = vmatprep.subr.bf16.mxu0 0
  %1780 = vmatpush1.bf16.msra.mxu0 %v1758
  %1781 = vmatprep.subr.bf16.mxu0 0
  %1782 = vmatpush1.bf16.msra.mxu0 %v1759
  %1783 = vmatprep.subr.bf16.mxu0 0
  %1784 = vmatpush1.bf16.msra.mxu0 %v1760
  %1785 = vmatprep.subr.bf16.mxu0 0
  %1786 = vmatpush1.bf16.msra.mxu0 0
  %1787 = vmatprep.subr.bf16.mxu0 0
  %1788 = vmatpush1.bf16.msra.mxu0 0
  %1789 = vmatprep.subr.bf16.mxu0 0
  %1790 = vmatpush1.bf16.msra.mxu0 0
  %1791 = vmatprep.subr.bf16.mxu0 0
  %1792 = vmatpush1.bf16.msra.mxu0 0
  %1793 = vmatprep.subr.bf16.mxu0 0
  %1794 = vmatpush1.bf16.msra.mxu0 0
  %1795 = vmatprep.subr.bf16.mxu0 0
  %1796 = vmatpush1.bf16.msra.mxu0 0
  %1797 = vmatprep.subr.bf16.mxu0 0
  %1798 = vmatpush1.bf16.msra.mxu0 0
  %1799 = vmatprep.subr.bf16.mxu0 0
  %1800 = vmatpush1.bf16.msra.mxu0 0
  %1801 = vmatprep.mubr.bf16.mxu0 0
  %1802 = vmatmul.mubr.bf16.gmra.mrb[0].mxu0 %v1697
  %v1803 = vpop.f32.mrb[0].mxu0
  %v1804 = vadd.f32 %v1719, %v1803
  %v1805 = vpop.f32.mrb[0].mxu0
  %v1806 = vpop.f32.mrb[0].mxu0
  %v1807 = vpop.f32.mrb[0].mxu0
  %1808 = vdwg.mxu0
  %v1809 = vmul.f32 %v1804, %v1804
  %vm1810 = vcmask 1043456
  %v1811 = vsel %vm1810, %v1809, 0.0
  %1812 = vadd.xlane.f32.xlu0 %v1811
  %v1813 = vpop.xlane.xlu0 %1812
  %v1814 = vadd.f32 %v1813, 1e-12
  %v1815 = vrsqrt.pop %v1814
  %v1816 = vmul.f32 %v1804, %v1815
  %1817 = vst [vmem:[%s8] sm:$0xf] %v1816
  // Predicated region
  $region30: #{constu_forward.1} parent=0 // pred_check
    _
  $region31: #{constu_forward.1} parent=0 // pred_check_branch
    %1819 = sbr.rel (0) target = $region33
  $region32: #{constu_forward.1} parent=0 // pred_region
    _
  $region33: #{constu_forward.1} parent=0 // pred_fallthru
    _
  // Predicated region
  $region34: #{constu_forward.1} parent=0 // pred_check
    _
  $region35: #{constu_forward.1} parent=0 // pred_check_branch
    %1821 = sbr.rel (0) target = $region37
  $region36: #{constu_forward.1} parent=0 // pred_region
    _
  $region37: #{constu_forward.1} parent=0 // pred_fallthru
    _
  // Predicated region
  $region38: #{constu_forward.1} parent=0 // pred_check
    _
  $region39: #{constu_forward.1} parent=0 // pred_check_branch
    %1823 = sbr.rel (0) target = $region41
  $region40: #{constu_forward.1} parent=0 // pred_region
    _
  $region41: #{constu_forward.1} parent=0 // pred_fallthru
    _
  // Predicated region
  $region42: #{constu_forward.1} parent=0 // pred_check
    _
  $region43: #{constu_forward.1} parent=0 // pred_check_branch
    %1825 = sbr.rel (0) target = $region45
  $region44: #{constu_forward.1} parent=0 // pred_region
    _
  $region45: #{constu_forward.1} parent=0 // pred_fallthru
    _

</llo_original>
